<compile_context>
chip_gen: v6e
topology: v6e:2x2x1
jax: 0.10.0
libtpu: 0.0.40
codegen_flags: <defaults>
</compile_context>

<pallas_src>
import functools
import math

import jax
import jax.numpy as jnp
from jax.experimental import pallas as pl
from jax.experimental.pallas import tpu as pltpu

LN_EPS = 1e-5  # nn.LayerNorm default


def _layer_norm_f32(x, gamma, beta):
    x = x.astype(jnp.float32)
    mu = jnp.mean(x, axis=-1, keepdims=True)
    var = jnp.mean(jnp.square(x - mu), axis=-1, keepdims=True)
    return (x - mu) * jax.lax.rsqrt(var + LN_EPS) * gamma + beta


def _light_group_attn_kernel(q_ref, k_ref, v_ref, ln_ref, wkt_ref, *rest,
                             num_heads, head_dim, scale, has_bias,
                             compute_dtype):
    if has_bias:
        bias_ref, o_ref, kp_scr, vn_scr = rest
    else:
        bias_ref = None
        o_ref, kp_scr, vn_scr = rest

    qi = pl.program_id(1)

    # LN(k) + k-projection and LN(v) are identical for every q tile of the same
    # batch element: compute once (first q tile) and cache in VMEM scratch that
    # persists across the inner ("arbitrary") grid axis.
    @pl.when(qi == 0)
    def _():
        k_n = _layer_norm_f32(k_ref[0], ln_ref[2:3], ln_ref[3:4])
        # Wk arrives pre-transposed & pre-cast -> straight (nk, C) @ (C, C) MXU
        # matmul, f32 accumulation.
        kp = jnp.dot(k_n.astype(compute_dtype), wkt_ref[...],
                     preferred_element_type=jnp.float32)
        kp_scr[...] = kp.astype(compute_dtype)
        v_n = _layer_norm_f32(v_ref[0], ln_ref[4:5], ln_ref[5:6])
        vn_scr[...] = v_n.astype(compute_dtype)

    q_n = _layer_norm_f32(q_ref[0], ln_ref[0:1], ln_ref[1:2])
    q_n = q_n.astype(compute_dtype)
    kp = kp_scr[...]
    vn = vn_scr[...]

    if has_bias:
        bias = bias_ref[0].astype(jnp.float32)  # (tq, nk), broadcast over heads

    # num_heads is small & static -> unrolled Python loop. Per-head outputs are
    # collected and written with ONE lane-dense (tq, C) store.
    outs = []
    for h in range(num_heads):
        lo = h * head_dim
        qh = q_n[:, lo:lo + head_dim]          # (tq, hd)
        kh = kp[:, lo:lo + head_dim]           # (nk, hd)
        vh = vn[:, lo:lo + head_dim]           # (nk, hd)

        # QK^T without an explicit transpose (contract over hd).
        s = jnp.einsum("qd,kd->qk", qh, kh,
                       preferred_element_type=jnp.float32) * scale
        if has_bias:
            s = s + bias
        s = s - jnp.max(s, axis=-1, keepdims=True)
        p = jnp.exp(s)
        # approx reciprocal -> EUP slot (otherwise idle); plenty accurate here.
        p = p * pl.reciprocal(jnp.sum(p, axis=-1, keepdims=True), approx=True)

        outs.append(jnp.dot(p.astype(compute_dtype), vh,
                            preferred_element_type=jnp.float32))

    o_ref[0] = jnp.concatenate(outs, axis=-1).astype(o_ref.dtype)


def _pick_q_tile(nq, target=256):
    """Largest q tile <= target that divides nq (multiple of 8), else whole nq."""
    if nq <= target:
        return nq
    for t in range(target - target % 8, 7, -8):
        if nq % t == 0:
            return t
    return nq


def light_group_attn_block(query, key, value, att_bias, params, *,
                           num_heads, qk_scale=None,
                           compute_dtype=jnp.bfloat16):
    """Pallas implementation of LightGroupAttnBlock.forward.

    query: (B, nq, C), key/value: (B, nk, C), att_bias: (B, nq, nk) or None.
    Returns (B, nq, C).
    """
    B, nq, C = query.shape
    _, nk, _ = key.shape
    head_dim = C // num_heads
    scale = float(qk_scale) if qk_scale is not None else head_dim ** -0.5
    has_bias = att_bias is not None

    # Pack the six LayerNorm affine vectors into a single (8, C) operand
    # (rows: g_q, b_q, g_k, b_k, g_v, b_v, pad, pad) -> one constant-index DMA.
    ln_rows = [params["gamma_q"], params["beta_q"],
               params["gamma_k"], params["beta_k"],
               params["gamma_v"], params["beta_v"]]
    ln_params = jnp.stack([r.astype(jnp.float32) for r in ln_rows]
                          + [jnp.zeros((C,), jnp.float32)] * 2)

    # Pre-transpose (trace time, free) + pre-cast the k-projection weight.
    wkt = params["w_k"].T.astype(compute_dtype)       # (C_in, C_out)

    tq = _pick_q_tile(nq)
    num_q_tiles = nq // tq

    kernel = functools.partial(
        _light_group_attn_kernel, num_heads=num_heads, head_dim=head_dim,
        scale=scale, has_bias=has_bias, compute_dtype=compute_dtype)

    in_specs = [
        pl.BlockSpec((1, tq, C), lambda b, qi: (b, qi, 0)),   # query
        pl.BlockSpec((1, nk, C), lambda b, qi: (b, 0, 0)),    # key
        pl.BlockSpec((1, nk, C), lambda b, qi: (b, 0, 0)),    # value
        pl.BlockSpec((8, C), lambda b, qi: (0, 0)),           # packed LN params
        pl.BlockSpec((C, C), lambda b, qi: (0, 0)),           # Wk^T
    ]
    args = [query, key, value, ln_params, wkt]
    if has_bias:
        in_specs.append(pl.BlockSpec((1, tq, nk), lambda b, qi: (b, qi, 0)))
        args.append(att_bias)

    def nbytes(shape, dtype):
        return math.prod(shape) * jnp.dtype(dtype).itemsize

    # Rough per-step VMEM footprint (double-buffered blocks + resident bits),
    # capped at 64 MiB so the same setting is valid on v7x's smaller VMEM.
    block_bytes = (nbytes((tq, C), query.dtype)
                   + 2 * nbytes((nk, C), key.dtype)
                   + (nbytes((tq, nk), att_bias.dtype) if has_bias else 0)
                   + nbytes((tq, C), query.dtype))
    fixed_bytes = (nbytes((C, C), compute_dtype)
                   + nbytes((8, C), jnp.float32)
                   + 2 * nbytes((nk, C), compute_dtype)            # scratch
                   + num_heads * nbytes((tq, nk), jnp.float32))    # live scores
    vmem_limit = int(min(64 * 2**20,
                         max(32 * 2**20,
                             2 * block_bytes + fixed_bytes + (8 << 20))))

    grid_spec = pltpu.PrefetchScalarGridSpec(
        num_scalar_prefetch=0,
        grid=(B, num_q_tiles),
        in_specs=in_specs,
        out_specs=pl.BlockSpec((1, tq, C), lambda b, qi: (b, qi, 0)),
        scratch_shapes=[pltpu.VMEM((nk, C), compute_dtype),   # projected k
                        pltpu.VMEM((nk, C), compute_dtype)],  # normalized v
    )

    return pl.pallas_call(
        kernel,
        out_shape=jax.ShapeDtypeStruct((B, nq, C), query.dtype),
        grid_spec=grid_spec,
        compiler_params=pltpu.CompilerParams(
            dimension_semantics=("parallel", "arbitrary"),
            vmem_limit_bytes=vmem_limit),
    )(*args)


def _reference(query, key, value, att_bias, params, *, num_heads):
    """Pure-JAX f32 reference mirroring the PyTorch forward."""
    def ln(x, g, b):
        mu = x.mean(-1, keepdims=True)
        var = ((x - mu) ** 2).mean(-1, keepdims=True)
        return (x - mu) / jnp.sqrt(var + LN_EPS) * g + b

    q = ln(query, params["gamma_q"], params["beta_q"])
    k = ln(key, params["gamma_k"], params["beta_k"])
    v = ln(value, params["gamma_v"], params["beta_v"])
    k = k @ params["w_k"].T

    B, nq, C = q.shape
    nk = k.shape[1]
    hd = C // num_heads
    qh = q.reshape(B, nq, num_heads, hd).transpose(0, 2, 1, 3)
    kh = k.reshape(B, nk, num_heads, hd).transpose(0, 2, 1, 3)
    vh = v.reshape(B, nk, num_heads, hd).transpose(0, 2, 1, 3)

    s = jnp.einsum("bhqc,bhkc->bhqk", qh, kh) * hd ** -0.5
    if att_bias is not None:
        s = s + att_bias[:, None]
    a = jax.nn.softmax(s, axis=-1)
    o = jnp.einsum("bhqk,bhkc->bhqc", a, vh)
    return o.transpose(0, 2, 1, 3).reshape(B, nq, C)


if __name__ == "__main__":
    B, nq, nk, C, num_heads = 2, 8, 64, 32, 4

    key0 = jax.random.PRNGKey(0)
    ks = jax.random.split(key0, 11)

    query = jax.random.normal(ks[0], (B, nq, C), jnp.float32)
    key_t = jax.random.normal(ks[1], (B, nk, C), jnp.float32)
    value = jax.random.normal(ks[2], (B, nk, C), jnp.float32)
    att_bias = 0.1 * jax.random.normal(ks[3], (B, nq, nk), jnp.float32)

    params = {
        "gamma_q": 1.0 + 0.1 * jax.random.normal(ks[4], (C,), jnp.float32),
        "beta_q": 0.1 * jax.random.normal(ks[5], (C,), jnp.float32),
        "gamma_k": 1.0 + 0.1 * jax.random.normal(ks[6], (C,), jnp.float32),
        "beta_k": 0.1 * jax.random.normal(ks[7], (C,), jnp.float32),
        "gamma_v": 1.0 + 0.1 * jax.random.normal(ks[8], (C,), jnp.float32),
        "beta_v": 0.1 * jax.random.normal(ks[9], (C,), jnp.float32),
        # k_proj weight, nn.Linear(dim, dim, bias=False): y = x @ W^T
        "w_k": (1.0 / jnp.sqrt(C)) *
               jax.random.normal(ks[10], (C, C), jnp.float32),
    }

    # bf16 matmul inputs with f32 accumulation -> compare with loose tolerance.
    TOL = 5e-2

    # With att_bias.
    out = light_group_attn_block(query, key_t, value, att_bias, params,
                                 num_heads=num_heads)
    out = jax.block_until_ready(out)
    ref = _reference(query, key_t, value, att_bias, params,
                     num_heads=num_heads)
    assert out.shape == (B, nq, C)
    err = float(jnp.max(jnp.abs(out - ref)))
    assert err < TOL, f"with-bias max abs err {err}"

    # Without att_bias (bias-less kernel variant, no zeros tensor streamed).
    out2 = light_group_attn_block(query, key_t, value, None, params,
                                  num_heads=num_heads)
    out2 = jax.block_until_ready(out2)
    ref2 = _reference(query, key_t, value, None, params, num_heads=num_heads)
    err2 = float(jnp.max(jnp.abs(out2 - ref2)))
    assert err2 < TOL, f"no-bias max abs err {err2}"

    print("KERNEL_OK")
</pallas_src>

<mosaic_0001>
module attributes {stable_mosaic.version = 11 : i64} {
  func.func @_light_group_attn_kernel(%arg0: i32, %arg1: i32, %arg2: memref<1x8x32xf32, #tpu.memory_space<vmem>>, %arg3: memref<1x64x32xf32, #tpu.memory_space<vmem>>, %arg4: memref<1x64x32xf32, #tpu.memory_space<vmem>>, %arg5: memref<8x32xf32, #tpu.memory_space<vmem>>, %arg6: memref<32x32xbf16, #tpu.memory_space<vmem>>, %arg7: memref<1x8x64xf32, #tpu.memory_space<vmem>>, %arg8: memref<1x8x32xf32, #tpu.memory_space<vmem>>, %arg9: memref<64x32xbf16, #tpu.memory_space<vmem>>, %arg10: memref<64x32xbf16, #tpu.memory_space<vmem>>) attributes {dimension_semantics = [#tpu.dimension_semantics<parallel>, #tpu.dimension_semantics<arbitrary>], iteration_bounds = array<i64: 2, 1>, scalar_prefetch = 0 : i64, scratch_operands = 2 : i64, tpu.core_type = #tpu.core_type<tc>, window_params = [{transform_indices = @transform_0, window_bounds = array<i64: 1, 8, 32>}, {transform_indices = @transform_1, window_bounds = array<i64: 1, 64, 32>}, {transform_indices = @transform_2, window_bounds = array<i64: 1, 64, 32>}, {pipeline_mode = #tpu.pipeline_mode<synchronous>, transform_indices = @transform_3, window_bounds = array<i64: 8, 32>}, {pipeline_mode = #tpu.pipeline_mode<synchronous>, transform_indices = @transform_4, window_bounds = array<i64: 32, 32>}, {transform_indices = @transform_5, window_bounds = array<i64: 1, 8, 64>}, {transform_indices = @transform_6, window_bounds = array<i64: 1, 8, 32>}]} {
    %c0_i32 = arith.constant 0 : i32
    %0 = arith.cmpi eq, %arg1, %c0_i32 : i32
    %1 = arith.extui %0 : i1 to i32
    %c0_i32_0 = arith.constant 0 : i32
    %2 = arith.cmpi ne, %1, %c0_i32_0 : i32
    scf.if %2 {
      %c0_40 = arith.constant 0 : index
      %c0_41 = arith.constant 0 : index
      %c0_42 = arith.constant 0 : index
      %114 = vector.load %arg3[%c0_40, %c0_41, %c0_42] : memref<1x64x32xf32, #tpu.memory_space<vmem>>, vector<1x64x32xf32>
      %115 = vector.shape_cast %114 : vector<1x64x32xf32> to vector<64x32xf32>
      %c2 = arith.constant 2 : index
      %c0_43 = arith.constant 0 : index
      %116 = vector.load %arg5[%c2, %c0_43] : memref<8x32xf32, #tpu.memory_space<vmem>>, vector<1x32xf32>
      %c3 = arith.constant 3 : index
      %c0_44 = arith.constant 0 : index
      %117 = vector.load %arg5[%c3, %c0_44] : memref<8x32xf32, #tpu.memory_space<vmem>>, vector<1x32xf32>
      %cst_45 = arith.constant dense<0.000000e+00> : vector<64xf32>
      %118 = vector.multi_reduction <add>, %115, %cst_45 [1] : vector<64x32xf32> to vector<64xf32>
      %119 = vector.shape_cast %118 : vector<64xf32> to vector<64x1xf32>
      %cst_46 = arith.constant 3.200000e+01 : f32
      %120 = vector.broadcast %cst_46 : f32 to vector<64x1xf32>
      %121 = arith.divf %119, %120 : vector<64x1xf32>
      %122 = vector.broadcast %121 : vector<64x1xf32> to vector<64x32xf32>
      %123 = arith.subf %115, %122 : vector<64x32xf32>
      %124 = arith.mulf %123, %123 : vector<64x32xf32>
      %cst_47 = arith.constant dense<0.000000e+00> : vector<64xf32>
      %125 = vector.multi_reduction <add>, %124, %cst_47 [1] : vector<64x32xf32> to vector<64xf32>
      %126 = vector.shape_cast %125 : vector<64xf32> to vector<64x1xf32>
      %cst_48 = arith.constant 3.200000e+01 : f32
      %127 = vector.broadcast %cst_48 : f32 to vector<64x1xf32>
      %128 = arith.divf %126, %127 : vector<64x1xf32>
      %129 = vector.broadcast %121 : vector<64x1xf32> to vector<64x32xf32>
      %130 = arith.subf %115, %129 : vector<64x32xf32>
      %cst_49 = arith.constant 9.99999974E-6 : f32
      %131 = vector.broadcast %cst_49 : f32 to vector<64x1xf32>
      %132 = arith.addf %128, %131 : vector<64x1xf32>
      %133 = math.rsqrt %132 : vector<64x1xf32>
      %134 = vector.broadcast %133 : vector<64x1xf32> to vector<64x32xf32>
      %135 = arith.mulf %130, %134 : vector<64x32xf32>
      %136 = vector.broadcast %116 : vector<1x32xf32> to vector<64x32xf32>
      %137 = arith.mulf %135, %136 : vector<64x32xf32>
      %138 = vector.broadcast %117 : vector<1x32xf32> to vector<64x32xf32>
      %139 = arith.addf %137, %138 : vector<64x32xf32>
      %140 = arith.truncf %139 : vector<64x32xf32> to vector<64x32xbf16>
      %c0_50 = arith.constant 0 : index
      %c0_51 = arith.constant 0 : index
      %141 = vector.load %arg6[%c0_50, %c0_51] : memref<32x32xbf16, #tpu.memory_space<vmem>>, vector<32x32xbf16>
      %cst_52 = arith.constant dense<0.000000e+00> : vector<64x32xf32>
      %142 = tpu.matmul %140, %141, %cst_52 {dimension_numbers = #tpu.dot_dimension_numbers<[1], [0], [0], [1], [0, 0, 1, 1], [], []>} : vector<64x32xbf16>, vector<32x32xbf16>, vector<64x32xf32> -> vector<64x32xf32>
      %143 = arith.truncf %142 : vector<64x32xf32> to vector<64x32xbf16>
      %c0_53 = arith.constant 0 : index
      %c0_54 = arith.constant 0 : index
      %144 = vector.load %arg9[%c0_53, %c0_54] : memref<64x32xbf16, #tpu.memory_space<vmem>>, vector<64x32xbf16>
      tpu.vector_store %arg9[%c0_53, %c0_54], %143 {strides = array<i32>} : memref<64x32xbf16, #tpu.memory_space<vmem>>, vector<64x32xbf16>,
      %c0_55 = arith.constant 0 : index
      %c0_56 = arith.constant 0 : index
      %c0_57 = arith.constant 0 : index
      %145 = vector.load %arg4[%c0_55, %c0_56, %c0_57] : memref<1x64x32xf32, #tpu.memory_space<vmem>>, vector<1x64x32xf32>
      %146 = vector.shape_cast %145 : vector<1x64x32xf32> to vector<64x32xf32>
      %c4 = arith.constant 4 : index
      %c0_58 = arith.constant 0 : index
      %147 = vector.load %arg5[%c4, %c0_58] : memref<8x32xf32, #tpu.memory_space<vmem>>, vector<1x32xf32>
      %c5 = arith.constant 5 : index
      %c0_59 = arith.constant 0 : index
      %148 = vector.load %arg5[%c5, %c0_59] : memref<8x32xf32, #tpu.memory_space<vmem>>, vector<1x32xf32>
      %cst_60 = arith.constant dense<0.000000e+00> : vector<64xf32>
      %149 = vector.multi_reduction <add>, %146, %cst_60 [1] : vector<64x32xf32> to vector<64xf32>
      %150 = vector.shape_cast %149 : vector<64xf32> to vector<64x1xf32>
      %cst_61 = arith.constant 3.200000e+01 : f32
      %151 = vector.broadcast %cst_61 : f32 to vector<64x1xf32>
      %152 = arith.divf %150, %151 : vector<64x1xf32>
      %153 = vector.broadcast %152 : vector<64x1xf32> to vector<64x32xf32>
      %154 = arith.subf %146, %153 : vector<64x32xf32>
      %155 = arith.mulf %154, %154 : vector<64x32xf32>
      %cst_62 = arith.constant dense<0.000000e+00> : vector<64xf32>
      %156 = vector.multi_reduction <add>, %155, %cst_62 [1] : vector<64x32xf32> to vector<64xf32>
      %157 = vector.shape_cast %156 : vector<64xf32> to vector<64x1xf32>
      %cst_63 = arith.constant 3.200000e+01 : f32
      %158 = vector.broadcast %cst_63 : f32 to vector<64x1xf32>
      %159 = arith.divf %157, %158 : vector<64x1xf32>
      %160 = vector.broadcast %152 : vector<64x1xf32> to vector<64x32xf32>
      %161 = arith.subf %146, %160 : vector<64x32xf32>
      %cst_64 = arith.constant 9.99999974E-6 : f32
      %162 = vector.broadcast %cst_64 : f32 to vector<64x1xf32>
      %163 = arith.addf %159, %162 : vector<64x1xf32>
      %164 = math.rsqrt %163 : vector<64x1xf32>
      %165 = vector.broadcast %164 : vector<64x1xf32> to vector<64x32xf32>
      %166 = arith.mulf %161, %165 : vector<64x32xf32>
      %167 = vector.broadcast %147 : vector<1x32xf32> to vector<64x32xf32>
      %168 = arith.mulf %166, %167 : vector<64x32xf32>
      %169 = vector.broadcast %148 : vector<1x32xf32> to vector<64x32xf32>
      %170 = arith.addf %168, %169 : vector<64x32xf32>
      %171 = arith.truncf %170 : vector<64x32xf32> to vector<64x32xbf16>
      %c0_65 = arith.constant 0 : index
      %c0_66 = arith.constant 0 : index
      %172 = vector.load %arg10[%c0_65, %c0_66] : memref<64x32xbf16, #tpu.memory_space<vmem>>, vector<64x32xbf16>
      tpu.vector_store %arg10[%c0_65, %c0_66], %171 {strides = array<i32>} : memref<64x32xbf16, #tpu.memory_space<vmem>>, vector<64x32xbf16>,
    } else {
    }
    %c0 = arith.constant 0 : index
    %c0_1 = arith.constant 0 : index
    %c0_2 = arith.constant 0 : index
    %3 = vector.load %arg2[%c0, %c0_1, %c0_2] : memref<1x8x32xf32, #tpu.memory_space<vmem>>, vector<1x8x32xf32>
    %4 = vector.shape_cast %3 : vector<1x8x32xf32> to vector<8x32xf32>
    %c0_3 = arith.constant 0 : index
    %c0_4 = arith.constant 0 : index
    %5 = vector.load %arg5[%c0_3, %c0_4] : memref<8x32xf32, #tpu.memory_space<vmem>>, vector<1x32xf32>
    %c1 = arith.constant 1 : index
    %c0_5 = arith.constant 0 : index
    %6 = vector.load %arg5[%c1, %c0_5] : memref<8x32xf32, #tpu.memory_space<vmem>>, vector<1x32xf32>
    %cst = arith.constant dense<0.000000e+00> : vector<8xf32>
    %7 = vector.multi_reduction <add>, %4, %cst [1] : vector<8x32xf32> to vector<8xf32>
    %8 = vector.shape_cast %7 : vector<8xf32> to vector<8x1xf32>
    %cst_6 = arith.constant 3.200000e+01 : f32
    %9 = vector.broadcast %cst_6 : f32 to vector<8x1xf32>
    %10 = arith.divf %8, %9 : vector<8x1xf32>
    %11 = vector.broadcast %10 : vector<8x1xf32> to vector<8x32xf32>
    %12 = arith.subf %4, %11 : vector<8x32xf32>
    %13 = arith.mulf %12, %12 : vector<8x32xf32>
    %cst_7 = arith.constant dense<0.000000e+00> : vector<8xf32>
    %14 = vector.multi_reduction <add>, %13, %cst_7 [1] : vector<8x32xf32> to vector<8xf32>
    %15 = vector.shape_cast %14 : vector<8xf32> to vector<8x1xf32>
    %cst_8 = arith.constant 3.200000e+01 : f32
    %16 = vector.broadcast %cst_8 : f32 to vector<8x1xf32>
    %17 = arith.divf %15, %16 : vector<8x1xf32>
    %18 = vector.broadcast %10 : vector<8x1xf32> to vector<8x32xf32>
    %19 = arith.subf %4, %18 : vector<8x32xf32>
    %cst_9 = arith.constant 9.99999974E-6 : f32
    %20 = vector.broadcast %cst_9 : f32 to vector<8x1xf32>
    %21 = arith.addf %17, %20 : vector<8x1xf32>
    %22 = math.rsqrt %21 : vector<8x1xf32>
    %23 = vector.broadcast %22 : vector<8x1xf32> to vector<8x32xf32>
    %24 = arith.mulf %19, %23 : vector<8x32xf32>
    %25 = vector.broadcast %5 : vector<1x32xf32> to vector<8x32xf32>
    %26 = arith.mulf %24, %25 : vector<8x32xf32>
    %27 = vector.broadcast %6 : vector<1x32xf32> to vector<8x32xf32>
    %28 = arith.addf %26, %27 : vector<8x32xf32>
    %29 = arith.truncf %28 : vector<8x32xf32> to vector<8x32xbf16>
    %c0_10 = arith.constant 0 : index
    %c0_11 = arith.constant 0 : index
    %30 = vector.load %arg9[%c0_10, %c0_11] : memref<64x32xbf16, #tpu.memory_space<vmem>>, vector<64x32xbf16>
    %c0_12 = arith.constant 0 : index
    %c0_13 = arith.constant 0 : index
    %31 = vector.load %arg10[%c0_12, %c0_13] : memref<64x32xbf16, #tpu.memory_space<vmem>>, vector<64x32xbf16>
    %c0_14 = arith.constant 0 : index
    %c0_15 = arith.constant 0 : index
    %c0_16 = arith.constant 0 : index
    %32 = vector.load %arg7[%c0_14, %c0_15, %c0_16] : memref<1x8x64xf32, #tpu.memory_space<vmem>>, vector<1x8x64xf32>
    %33 = vector.shape_cast %32 : vector<1x8x64xf32> to vector<8x64xf32>
    %34 = vector.extract_strided_slice %29 {offsets = [0, 0], sizes = [8, 8], strides = [1, 1]} : vector<8x32xbf16> to vector<8x8xbf16>
    %35 = vector.extract_strided_slice %30 {offsets = [0, 0], sizes = [64, 8], strides = [1, 1]} : vector<64x32xbf16> to vector<64x8xbf16>
    %36 = vector.extract_strided_slice %31 {offsets = [0, 0], sizes = [64, 8], strides = [1, 1]} : vector<64x32xbf16> to vector<64x8xbf16>
    "tpu.trace_start"() <{level = 10 : i32, message = "qd,kd->qk"}> : () -> ()
    %cst_17 = arith.constant dense<0.000000e+00> : vector<8x64xf32>
    %37 = tpu.matmul %34, %35, %cst_17 {dimension_numbers = #tpu.dot_dimension_numbers<[1], [1], [0], [0], [0, 0, 1, 0], [], []>} : vector<8x8xbf16>, vector<64x8xbf16>, vector<8x64xf32> -> vector<8x64xf32>
    "tpu.trace_stop"() : () -> ()
    %cst_18 = arith.constant 0.353553385 : f32
    %38 = vector.broadcast %cst_18 : f32 to vector<8x64xf32>
    %39 = arith.mulf %37, %38 : vector<8x64xf32>
    %40 = arith.addf %39, %33 : vector<8x64xf32>
    %cst_19 = arith.constant dense<0xFF800000> : vector<8xf32>
    %41 = vector.multi_reduction <maximumf>, %40, %cst_19 [1] : vector<8x64xf32> to vector<8xf32>
    %42 = vector.shape_cast %41 : vector<8xf32> to vector<8x1xf32>
    %43 = vector.broadcast %42 : vector<8x1xf32> to vector<8x64xf32>
    %44 = arith.subf %40, %43 : vector<8x64xf32>
    %45 = math.exp %44 : vector<8x64xf32>
    %cst_20 = arith.constant dense<0.000000e+00> : vector<8xf32>
    %46 = vector.multi_reduction <add>, %45, %cst_20 [1] : vector<8x64xf32> to vector<8xf32>
    %47 = vector.shape_cast %46 : vector<8xf32> to vector<8x1xf32>
    %48 = tpu.reciprocal %47 {approx = true} : vector<8x1xf32> -> vector<8x1xf32>
    %49 = vector.broadcast %48 : vector<8x1xf32> to vector<8x64xf32>
    %50 = arith.mulf %45, %49 : vector<8x64xf32>
    %51 = arith.truncf %50 : vector<8x64xf32> to vector<8x64xbf16>
    %cst_21 = arith.constant dense<0.000000e+00> : vector<8x8xf32>
    %52 = tpu.matmul %51, %36, %cst_21 {dimension_numbers = #tpu.dot_dimension_numbers<[1], [0], [0], [1], [0, 0, 1, 1], [], []>} : vector<8x64xbf16>, vector<64x8xbf16>, vector<8x8xf32> -> vector<8x8xf32>
    %53 = vector.extract_strided_slice %29 {offsets = [0, 8], sizes = [8, 8], strides = [1, 1]} : vector<8x32xbf16> to vector<8x8xbf16>
    %54 = vector.extract_strided_slice %30 {offsets = [0, 8], sizes = [64, 8], strides = [1, 1]} : vector<64x32xbf16> to vector<64x8xbf16>
    %55 = vector.extract_strided_slice %31 {offsets = [0, 8], sizes = [64, 8], strides = [1, 1]} : vector<64x32xbf16> to vector<64x8xbf16>
    "tpu.trace_start"() <{level = 10 : i32, message = "qd,kd->qk"}> : () -> ()
    %cst_22 = arith.constant dense<0.000000e+00> : vector<8x64xf32>
    %56 = tpu.matmul %53, %54, %cst_22 {dimension_numbers = #tpu.dot_dimension_numbers<[1], [1], [0], [0], [0, 0, 1, 0], [], []>} : vector<8x8xbf16>, vector<64x8xbf16>, vector<8x64xf32> -> vector<8x64xf32>
    "tpu.trace_stop"() : () -> ()
    %cst_23 = arith.constant 0.353553385 : f32
    %57 = vector.broadcast %cst_23 : f32 to vector<8x64xf32>
    %58 = arith.mulf %56, %57 : vector<8x64xf32>
    %59 = arith.addf %58, %33 : vector<8x64xf32>
    %cst_24 = arith.constant dense<0xFF800000> : vector<8xf32>
    %60 = vector.multi_reduction <maximumf>, %59, %cst_24 [1] : vector<8x64xf32> to vector<8xf32>
    %61 = vector.shape_cast %60 : vector<8xf32> to vector<8x1xf32>
    %62 = vector.broadcast %61 : vector<8x1xf32> to vector<8x64xf32>
    %63 = arith.subf %59, %62 : vector<8x64xf32>
    %64 = math.exp %63 : vector<8x64xf32>
    %cst_25 = arith.constant dense<0.000000e+00> : vector<8xf32>
    %65 = vector.multi_reduction <add>, %64, %cst_25 [1] : vector<8x64xf32> to vector<8xf32>
    %66 = vector.shape_cast %65 : vector<8xf32> to vector<8x1xf32>
    %67 = tpu.reciprocal %66 {approx = true} : vector<8x1xf32> -> vector<8x1xf32>
    %68 = vector.broadcast %67 : vector<8x1xf32> to vector<8x64xf32>
    %69 = arith.mulf %64, %68 : vector<8x64xf32>
    %70 = arith.truncf %69 : vector<8x64xf32> to vector<8x64xbf16>
    %cst_26 = arith.constant dense<0.000000e+00> : vector<8x8xf32>
    %71 = tpu.matmul %70, %55, %cst_26 {dimension_numbers = #tpu.dot_dimension_numbers<[1], [0], [0], [1], [0, 0, 1, 1], [], []>} : vector<8x64xbf16>, vector<64x8xbf16>, vector<8x8xf32> -> vector<8x8xf32>
    %72 = vector.extract_strided_slice %29 {offsets = [0, 16], sizes = [8, 8], strides = [1, 1]} : vector<8x32xbf16> to vector<8x8xbf16>
    %73 = vector.extract_strided_slice %30 {offsets = [0, 16], sizes = [64, 8], strides = [1, 1]} : vector<64x32xbf16> to vector<64x8xbf16>
    %74 = vector.extract_strided_slice %31 {offsets = [0, 16], sizes = [64, 8], strides = [1, 1]} : vector<64x32xbf16> to vector<64x8xbf16>
    "tpu.trace_start"() <{level = 10 : i32, message = "qd,kd->qk"}> : () -> ()
    %cst_27 = arith.constant dense<0.000000e+00> : vector<8x64xf32>
    %75 = tpu.matmul %72, %73, %cst_27 {dimension_numbers = #tpu.dot_dimension_numbers<[1], [1], [0], [0], [0, 0, 1, 0], [], []>} : vector<8x8xbf16>, vector<64x8xbf16>, vector<8x64xf32> -> vector<8x64xf32>
    "tpu.trace_stop"() : () -> ()
    %cst_28 = arith.constant 0.353553385 : f32
    %76 = vector.broadcast %cst_28 : f32 to vector<8x64xf32>
    %77 = arith.mulf %75, %76 : vector<8x64xf32>
    %78 = arith.addf %77, %33 : vector<8x64xf32>
    %cst_29 = arith.constant dense<0xFF800000> : vector<8xf32>
    %79 = vector.multi_reduction <maximumf>, %78, %cst_29 [1] : vector<8x64xf32> to vector<8xf32>
    %80 = vector.shape_cast %79 : vector<8xf32> to vector<8x1xf32>
    %81 = vector.broadcast %80 : vector<8x1xf32> to vector<8x64xf32>
    %82 = arith.subf %78, %81 : vector<8x64xf32>
    %83 = math.exp %82 : vector<8x64xf32>
    %cst_30 = arith.constant dense<0.000000e+00> : vector<8xf32>
    %84 = vector.multi_reduction <add>, %83, %cst_30 [1] : vector<8x64xf32> to vector<8xf32>
    %85 = vector.shape_cast %84 : vector<8xf32> to vector<8x1xf32>
    %86 = tpu.reciprocal %85 {approx = true} : vector<8x1xf32> -> vector<8x1xf32>
    %87 = vector.broadcast %86 : vector<8x1xf32> to vector<8x64xf32>
    %88 = arith.mulf %83, %87 : vector<8x64xf32>
    %89 = arith.truncf %88 : vector<8x64xf32> to vector<8x64xbf16>
    %cst_31 = arith.constant dense<0.000000e+00> : vector<8x8xf32>
    %90 = tpu.matmul %89, %74, %cst_31 {dimension_numbers = #tpu.dot_dimension_numbers<[1], [0], [0], [1], [0, 0, 1, 1], [], []>} : vector<8x64xbf16>, vector<64x8xbf16>, vector<8x8xf32> -> vector<8x8xf32>
    %91 = vector.extract_strided_slice %29 {offsets = [0, 24], sizes = [8, 8], strides = [1, 1]} : vector<8x32xbf16> to vector<8x8xbf16>
    %92 = vector.extract_strided_slice %30 {offsets = [0, 24], sizes = [64, 8], strides = [1, 1]} : vector<64x32xbf16> to vector<64x8xbf16>
    %93 = vector.extract_strided_slice %31 {offsets = [0, 24], sizes = [64, 8], strides = [1, 1]} : vector<64x32xbf16> to vector<64x8xbf16>
    "tpu.trace_start"() <{level = 10 : i32, message = "qd,kd->qk"}> : () -> ()
    %cst_32 = arith.constant dense<0.000000e+00> : vector<8x64xf32>
    %94 = tpu.matmul %91, %92, %cst_32 {dimension_numbers = #tpu.dot_dimension_numbers<[1], [1], [0], [0], [0, 0, 1, 0], [], []>} : vector<8x8xbf16>, vector<64x8xbf16>, vector<8x64xf32> -> vector<8x64xf32>
    "tpu.trace_stop"() : () -> ()
    %cst_33 = arith.constant 0.353553385 : f32
    %95 = vector.broadcast %cst_33 : f32 to vector<8x64xf32>
    %96 = arith.mulf %94, %95 : vector<8x64xf32>
    %97 = arith.addf %96, %33 : vector<8x64xf32>
    %cst_34 = arith.constant dense<0xFF800000> : vector<8xf32>
    %98 = vector.multi_reduction <maximumf>, %97, %cst_34 [1] : vector<8x64xf32> to vector<8xf32>
    %99 = vector.shape_cast %98 : vector<8xf32> to vector<8x1xf32>
    %100 = vector.broadcast %99 : vector<8x1xf32> to vector<8x64xf32>
    %101 = arith.subf %97, %100 : vector<8x64xf32>
    %102 = math.exp %101 : vector<8x64xf32>
    %cst_35 = arith.constant dense<0.000000e+00> : vector<8xf32>
    %103 = vector.multi_reduction <add>, %102, %cst_35 [1] : vector<8x64xf32> to vector<8xf32>
    %104 = vector.shape_cast %103 : vector<8xf32> to vector<8x1xf32>
    %105 = tpu.reciprocal %104 {approx = true} : vector<8x1xf32> -> vector<8x1xf32>
    %106 = vector.broadcast %105 : vector<8x1xf32> to vector<8x64xf32>
    %107 = arith.mulf %102, %106 : vector<8x64xf32>
    %108 = arith.truncf %107 : vector<8x64xf32> to vector<8x64xbf16>
    %cst_36 = arith.constant dense<0.000000e+00> : vector<8x8xf32>
    %109 = tpu.matmul %108, %93, %cst_36 {dimension_numbers = #tpu.dot_dimension_numbers<[1], [0], [0], [1], [0, 0, 1, 1], [], []>} : vector<8x64xbf16>, vector<64x8xbf16>, vector<8x8xf32> -> vector<8x8xf32>
    %110 = tpu.concatenate %52, %71, %90, %109 in 1 : vector<8x8xf32>, vector<8x8xf32>, vector<8x8xf32>, vector<8x8xf32> -> vector<8x32xf32>
    %c0_37 = arith.constant 0 : index
    %c0_38 = arith.constant 0 : index
    %c0_39 = arith.constant 0 : index
    %111 = vector.load %arg8[%c0_37, %c0_38, %c0_39] : memref<1x8x32xf32, #tpu.memory_space<vmem>>, vector<1x8x32xf32>
    %112 = vector.shape_cast %111 : vector<1x8x32xf32> to vector<8x32xf32>
    %113 = vector.shape_cast %110 : vector<8x32xf32> to vector<1x8x32xf32>
    tpu.vector_store %arg8[%c0_37, %c0_38, %c0_39], %113 {strides = array<i32>} : memref<1x8x32xf32, #tpu.memory_space<vmem>>, vector<1x8x32xf32>,
    return
  }
  func.func @transform_0(%arg0: i32, %arg1: i32) -> (i32, i32, i32) {
    %c0_i32 = arith.constant 0 : i32
    %c0_i32_0 = arith.constant 0 : i32
    return %arg0, %arg1, %c0_i32 : i32, i32, i32
  }
  func.func @transform_1(%arg0: i32, %arg1: i32) -> (i32, i32, i32) {
    %c0_i32 = arith.constant 0 : i32
    %c0_i32_0 = arith.constant 0 : i32
    %c0_i32_1 = arith.constant 0 : i32
    return %arg0, %c0_i32, %c0_i32_0 : i32, i32, i32
  }
  func.func @transform_2(%arg0: i32, %arg1: i32) -> (i32, i32, i32) {
    %c0_i32 = arith.constant 0 : i32
    %c0_i32_0 = arith.constant 0 : i32
    %c0_i32_1 = arith.constant 0 : i32
    return %arg0, %c0_i32, %c0_i32_0 : i32, i32, i32
  }
  func.func @transform_3(%arg0: i32, %arg1: i32) -> (i32, i32) {
    %c0_i32 = arith.constant 0 : i32
    %c0_i32_0 = arith.constant 0 : i32
    %c0_i32_1 = arith.constant 0 : i32
    return %c0_i32, %c0_i32_0 : i32, i32
  }
  func.func @transform_4(%arg0: i32, %arg1: i32) -> (i32, i32) {
    %c0_i32 = arith.constant 0 : i32
    %c0_i32_0 = arith.constant 0 : i32
    %c0_i32_1 = arith.constant 0 : i32
    return %c0_i32, %c0_i32_0 : i32, i32
  }
  func.func @transform_5(%arg0: i32, %arg1: i32) -> (i32, i32, i32) {
    %c0_i32 = arith.constant 0 : i32
    %c0_i32_0 = arith.constant 0 : i32
    return %arg0, %arg1, %c0_i32 : i32, i32, i32
  }
  func.func @transform_6(%arg0: i32, %arg1: i32) -> (i32, i32, i32) {
    %c0_i32 = arith.constant 0 : i32
    %c0_i32_0 = arith.constant 0 : i32
    return %arg0, %arg1, %c0_i32 : i32, i32, i32
  }
}

</mosaic_0001>

<llo_original>
// kernel: tpu_custom_call.1
$region0: #{tpu_custom_call.1}
  #allocation0 [shape = 'u32[]', space=smem, size = 0x4, offset = 0x4, fixed_abs, tag = 'smem constant byte address 0x4 - core index']
  #allocation1 [shape = 'u32[144,128]{1,0:T(1,128)}', space=vmem, size = 0x12000, scoped, tag = 'internal scratch']
  #allocation2 [shape = 'bf16[64,32]{1,0:T(8,128)(2,1)}', space=vmem, size = 0x4000, scoped, tag = 'scratch operand']
  #allocation3 [shape = 'bf16[64,32]{1,0:T(8,128)(2,1)}', space=vmem, size = 0x4000, scoped, tag = 'scratch operand']
  %s0 = inlined_call_operand.vmem [shape: f32[2,8,32], index: 0, kind: input, shape index: {}]
  %s1 = inlined_call_operand.vmem [shape: f32[2,64,32], index: 1, kind: input, shape index: {}]
  %s2 = inlined_call_operand.vmem [shape: f32[2,64,32], index: 2, kind: input, shape index: {}]
  %s3 = inlined_call_operand.vmem [shape: f32[8,32], index: 3, kind: input, shape index: {}]
  %s4 = inlined_call_operand.vmem [shape: bf16[32,32], index: 4, kind: input, shape index: {}]
  %s5 = inlined_call_operand.vmem [shape: f32[2,8,64], index: 5, kind: input, shape index: {}]
  %s6 = inlined_call_operand.hbm [shape: f32[2,8,32], index: 6, kind: output, shape index: {}]
  %s7 = sld [smem:[#allocation0]]
  $region61: #{tpu_custom_call.1} parent=0
    _
  %s9 = ssub.s32 1, %s7
  %s10 = scalar_select 0, %s9, %s7
  $region1: #{tpu_custom_call.1} parent=0
    #allocation4 [shape = 'u8[8192]{0}', space=vmem, size = 0x2000, scoped, tag = 'output window, operand 0']
    #allocation5 [shape = 's32[2]{0}', space=sflag, size = 0x8, scoped, tag = 'scoped memory for tpu_custom_call.1']
    %11 = vsyncpa [#allocation5], 0
    %s12 = scalar_lea.sflag [#allocation5], 1
    %13 = vsyncpa %s12, 0
    loop: start=0, step=1, limit=4
    $region2: #{tpu_custom_call.1} parent=1 // loop_pre_header
      _
    $region3: #{tpu_custom_call.1} parent=1 // loop_header
      %s15 = sphi 0, %s19
      %p16 = scmp.ge.s32.totalorder %s15, 4
      %s22 = sphi 0, %s34
      %s23 = sphi 0, %s30
      %s24 = sphi 0, %s22
      %s25 = sphi 0, %s23
      %s26 = sphi 0, %s24
      %s27 = sphi 0, %s25
      %s39 = sphi 0, %s41
      %s42 = sphi 0, %s39
      %s43 = sphi 0, %s42
      %s59 = sphi 0, %s43
      %s65 = sphi 0, %s67
      %s68 = sphi 0, %s65
      %s69 = sphi 0, %s68
      %s85 = sphi 0, %s69
      %s91 = sphi 0, %s93
      %s94 = sphi 0, %s91
      %s95 = sphi 0, %s94
      %s111 = sphi 0, %s95
      %s115 = sphi 0, %s115
      %s117 = sphi 0, %s115
      %s118 = sphi 0, %s117
      %s132 = sphi 0, %s118
      %s136 = sphi 0, %s136
      %s138 = sphi 0, %s136
      %s139 = sphi 0, %s138
      %s153 = sphi 0, %s139
      %s161 = sphi 0, %s163
      %s164 = sphi 0, %s161
      %s165 = sphi 0, %s164
      %s181 = sphi 0, %s165
      %s189 = sphi 0, %s191
      %s192 = sphi 0, %s189
      %s193 = sphi 0, %s192
      %s209 = sphi 0, %s193
    $region4: #{tpu_custom_call.1} parent=1 // loop_header_branch
      %18 = sbr.rel (%p16) target = $region8
    $region5: #{tpu_custom_call.1} parent=1 // loop_body
      %s20 = ssub.s32 %s15, 1
      %s21 = ssub.s32 %s15, 2
      %s28 = sadd.s32 1, %s23
      %p29 = scmp.ge.s32.totalorder %s28, 1
      %s30 = scalar_select %p29, 0, %s28
      %s31 = sadd.s32 1, %s22
      %s32 = scalar_select %p29, %s31, %s22
      %p33 = scmp.ge.s32.totalorder %s32, 2
      %s34 = scalar_select %p33, 0, %s32
      %s35 = ssub.s32 %s22, %s34
      %s36 = ssub.s32 %s23, %s30
      %s37 = sor.u32 %s35, %s36
      %p38 = scmp.eq.s32.totalorder %s37, 0
      %s40 = sadd.s32 %s39, 1
      %s41 = scalar_select %p38, %s39, %s40
      %p44 = pneg %p38
      %p45 = scmp.eq.s32.totalorder %s15, 1
      %p46 = por %p44, %p45
      %p47 = scmp.ne.s32.totalorder %s39, %s42
      %p48 = scmp.eq.s32.totalorder %s15, 0
      %p49 = por %p47, %p48
      %p50 = scmp.ne.s32.totalorder %s39, %s42
      %p51 = scmp.eq.s32.totalorder %s20, 1
      %p52 = por %p50, %p51
      %p53 = scmp.ne.s32.totalorder %s42, %s43
      %p54 = scmp.eq.s32.totalorder %s20, 0
      %p55 = por %p53, %p54
      %p56 = scmp.ne.s32.totalorder %s42, %s43
      %p57 = scmp.eq.s32.totalorder %s21, 1
      %p58 = por %p56, %p57
      %p60 = scmp.ne.s32.totalorder %s43, %s59
      %p61 = scmp.eq.s32.totalorder %s21, 0
      %p62 = por %p60, %p61
      %s63 = ssub.s32 %s22, %s34
      %p64 = scmp.eq.s32.totalorder %s63, 0
      %s66 = sadd.s32 %s65, 1
      %s67 = scalar_select %p64, %s65, %s66
      %p70 = pneg %p64
      %p71 = scmp.eq.s32.totalorder %s15, 1
      %p72 = por %p70, %p71
      %p73 = scmp.ne.s32.totalorder %s65, %s68
      %p74 = scmp.eq.s32.totalorder %s15, 0
      %p75 = por %p73, %p74
      %p76 = scmp.ne.s32.totalorder %s65, %s68
      %p77 = scmp.eq.s32.totalorder %s20, 1
      %p78 = por %p76, %p77
      %p79 = scmp.ne.s32.totalorder %s68, %s69
      %p80 = scmp.eq.s32.totalorder %s20, 0
      %p81 = por %p79, %p80
      %p82 = scmp.ne.s32.totalorder %s68, %s69
      %p83 = scmp.eq.s32.totalorder %s21, 1
      %p84 = por %p82, %p83
      %p86 = scmp.ne.s32.totalorder %s69, %s85
      %p87 = scmp.eq.s32.totalorder %s21, 0
      %p88 = por %p86, %p87
      %s89 = ssub.s32 %s22, %s34
      %p90 = scmp.eq.s32.totalorder %s89, 0
      %s92 = sadd.s32 %s91, 1
      %s93 = scalar_select %p90, %s91, %s92
      %p96 = pneg %p90
      %p97 = scmp.eq.s32.totalorder %s15, 1
      %p98 = por %p96, %p97
      %p99 = scmp.ne.s32.totalorder %s91, %s94
      %p100 = scmp.eq.s32.totalorder %s15, 0
      %p101 = por %p99, %p100
      %p102 = scmp.ne.s32.totalorder %s91, %s94
      %p103 = scmp.eq.s32.totalorder %s20, 1
      %p104 = por %p102, %p103
      %p105 = scmp.ne.s32.totalorder %s94, %s95
      %p106 = scmp.eq.s32.totalorder %s20, 0
      %p107 = por %p105, %p106
      %p108 = scmp.ne.s32.totalorder %s94, %s95
      %p109 = scmp.eq.s32.totalorder %s21, 1
      %p110 = por %p108, %p109
      %p112 = scmp.ne.s32.totalorder %s95, %s111
      %p113 = scmp.eq.s32.totalorder %s21, 0
      %p114 = por %p112, %p113
      %s116 = sadd.s32 %s115, 1
      %p119 = scmp.eq.s32.totalorder %s15, 1
      %p120 = scmp.ne.s32.totalorder %s115, %s117
      %p121 = scmp.eq.s32.totalorder %s15, 0
      %p122 = por %p120, %p121
      %p123 = scmp.ne.s32.totalorder %s115, %s117
      %p124 = scmp.eq.s32.totalorder %s20, 1
      %p125 = por %p123, %p124
      %p126 = scmp.ne.s32.totalorder %s117, %s118
      %p127 = scmp.eq.s32.totalorder %s20, 0
      %p128 = por %p126, %p127
      %p129 = scmp.ne.s32.totalorder %s117, %s118
      %p130 = scmp.eq.s32.totalorder %s21, 1
      %p131 = por %p129, %p130
      %p133 = scmp.ne.s32.totalorder %s118, %s132
      %p134 = scmp.eq.s32.totalorder %s21, 0
      %p135 = por %p133, %p134
      %s137 = sadd.s32 %s136, 1
      %p140 = scmp.eq.s32.totalorder %s15, 1
      %p141 = scmp.ne.s32.totalorder %s136, %s138
      %p142 = scmp.eq.s32.totalorder %s15, 0
      %p143 = por %p141, %p142
      %p144 = scmp.ne.s32.totalorder %s136, %s138
      %p145 = scmp.eq.s32.totalorder %s20, 1
      %p146 = por %p144, %p145
      %p147 = scmp.ne.s32.totalorder %s138, %s139
      %p148 = scmp.eq.s32.totalorder %s20, 0
      %p149 = por %p147, %p148
      %p150 = scmp.ne.s32.totalorder %s138, %s139
      %p151 = scmp.eq.s32.totalorder %s21, 1
      %p152 = por %p150, %p151
      %p154 = scmp.ne.s32.totalorder %s139, %s153
      %p155 = scmp.eq.s32.totalorder %s21, 0
      %p156 = por %p154, %p155
      %s157 = ssub.s32 %s22, %s34
      %s158 = ssub.s32 %s23, %s30
      %s159 = sor.u32 %s157, %s158
      %p160 = scmp.eq.s32.totalorder %s159, 0
      %s162 = sadd.s32 %s161, 1
      %s163 = scalar_select %p160, %s161, %s162
      %p166 = pneg %p160
      %p167 = scmp.eq.s32.totalorder %s15, 1
      %p168 = por %p166, %p167
      %p169 = scmp.ne.s32.totalorder %s161, %s164
      %p170 = scmp.eq.s32.totalorder %s15, 0
      %p171 = por %p169, %p170
      %p172 = scmp.ne.s32.totalorder %s161, %s164
      %p173 = scmp.eq.s32.totalorder %s20, 1
      %p174 = por %p172, %p173
      %p175 = scmp.ne.s32.totalorder %s164, %s165
      %p176 = scmp.eq.s32.totalorder %s20, 0
      %p177 = por %p175, %p176
      %p178 = scmp.ne.s32.totalorder %s164, %s165
      %p179 = scmp.eq.s32.totalorder %s21, 1
      %p180 = por %p178, %p179
      %p182 = scmp.ne.s32.totalorder %s165, %s181
      %p183 = scmp.eq.s32.totalorder %s21, 0
      %p184 = por %p182, %p183
      %s185 = ssub.s32 %s22, %s34
      %s186 = ssub.s32 %s23, %s30
      %s187 = sor.u32 %s185, %s186
      %p188 = scmp.eq.s32.totalorder %s187, 0
      %s190 = sadd.s32 %s189, 1
      %s191 = scalar_select %p188, %s189, %s190
      %p194 = pneg %p188
      %p195 = scmp.eq.s32.totalorder %s15, 1
      %p196 = por %p194, %p195
      %p197 = scmp.ne.s32.totalorder %s189, %s192
      %p198 = scmp.eq.s32.totalorder %s15, 0
      %p199 = por %p197, %p198
      %p200 = scmp.ne.s32.totalorder %s189, %s192
      %p201 = scmp.eq.s32.totalorder %s20, 1
      %p202 = por %p200, %p201
      %p203 = scmp.ne.s32.totalorder %s192, %s193
      %p204 = scmp.eq.s32.totalorder %s20, 0
      %p205 = por %p203, %p204
      %p206 = scmp.ne.s32.totalorder %s192, %s193
      %p207 = scmp.eq.s32.totalorder %s21, 1
      %p208 = por %p206, %p207
      %p210 = scmp.ne.s32.totalorder %s193, %s209
      %p211 = scmp.eq.s32.totalorder %s21, 0
      %p212 = por %p210, %p211
      %p213 = scmp.le.s32.totalorder 1, %s15
      %p214 = scmp.lt.s32.totalorder %s15, 3
      %p215 = pnand %p213, %p214
      %p216 = pneg %p215
      // Predicated region
      $region9: #{tpu_custom_call.1} parent=5 // pred_check
        _
      $region10: #{tpu_custom_call.1} parent=5 // pred_check_branch
        %218 = sbr.rel (%p215) target = $region12
      $region11: #{tpu_custom_call.1} parent=5 // pred_region
        %s219 = ssub.s32 %s15, 1
        // Predicated region
        $region13: #{tpu_custom_call.1} parent=11 // pred_check
          %p220 = pneg %p128
        $region14: #{tpu_custom_call.1} parent=11 // pred_check_branch
          %222 = sbr.rel (%p220) target = $region16
        $region15: #{tpu_custom_call.1} parent=11 // pred_region
          _
        $region16: #{tpu_custom_call.1} parent=11 // pred_fallthru
          _
        // Predicated region
        $region17: #{tpu_custom_call.1} parent=11 // pred_check
          %p223 = pneg %p149
        $region18: #{tpu_custom_call.1} parent=11 // pred_check_branch
          %225 = sbr.rel (%p223) target = $region20
        $region19: #{tpu_custom_call.1} parent=11 // pred_region
          _
        $region20: #{tpu_custom_call.1} parent=11 // pred_fallthru
          _
      $region12: #{tpu_custom_call.1} parent=5 // pred_fallthru
        _
      %p226 = scmp.lt.s32.totalorder %s15, 2
      // Predicated region
      $region21: #{tpu_custom_call.1} parent=5 // pred_check
        %p227 = pneg %p226
      $region22: #{tpu_custom_call.1} parent=5 // pred_check_branch
        %229 = sbr.rel (%p227) target = $region24
      $region23: #{tpu_custom_call.1} parent=5 // pred_region
        // Predicated region
        $region25: #{tpu_custom_call.1} parent=23 // pred_check
          %p230 = pneg %p49
        $region26: #{tpu_custom_call.1} parent=23 // pred_check_branch
          %232 = sbr.rel (%p230) target = $region28
        $region27: #{tpu_custom_call.1} parent=23 // pred_region
          %p233 = scmp.lt.s32.totalorder %s22, 1
          %s234 = scalar_select %p233, %s22, 1
          %p235 = scmp.lt.s32.totalorder %s23, 0
          %s236 = scalar_select %p235, %s23, 0
          %s237 = sadd.s32 %s236, %s234
          %s238 = smul.addr %s237, 8
          %s239 = scalar_lea.vmem %s0, %s238
        $region28: #{tpu_custom_call.1} parent=23 // pred_fallthru
          _
        // Predicated region
        $region29: #{tpu_custom_call.1} parent=23 // pred_check
          %p240 = pneg %p75
        $region30: #{tpu_custom_call.1} parent=23 // pred_check_branch
          %242 = sbr.rel (%p240) target = $region32
        $region31: #{tpu_custom_call.1} parent=23 // pred_region
          %p243 = scmp.lt.s32.totalorder %s22, 1
          %s244 = scalar_select %p243, %s22, 1
          %s245 = smul.addr %s244, 8
          %s246 = smul.addr %s245, 8
          %s247 = scalar_lea.vmem %s1, %s246
        $region32: #{tpu_custom_call.1} parent=23 // pred_fallthru
          _
        // Predicated region
        $region33: #{tpu_custom_call.1} parent=23 // pred_check
          %p248 = pneg %p101
        $region34: #{tpu_custom_call.1} parent=23 // pred_check_branch
          %250 = sbr.rel (%p248) target = $region36
        $region35: #{tpu_custom_call.1} parent=23 // pred_region
          %p251 = scmp.lt.s32.totalorder %s22, 1
          %s252 = scalar_select %p251, %s22, 1
          %s253 = smul.addr %s252, 8
          %s254 = smul.addr %s253, 8
          %s255 = scalar_lea.vmem %s2, %s254
        $region36: #{tpu_custom_call.1} parent=23 // pred_fallthru
          _
        // Predicated region
        $region37: #{tpu_custom_call.1} parent=23 // pred_check
          %p256 = pneg %p171
        $region38: #{tpu_custom_call.1} parent=23 // pred_check_branch
          %258 = sbr.rel (%p256) target = $region40
        $region39: #{tpu_custom_call.1} parent=23 // pred_region
          %p259 = scmp.lt.s32.totalorder %s22, 1
          %s260 = scalar_select %p259, %s22, 1
          %p261 = scmp.lt.s32.totalorder %s23, 0
          %s262 = scalar_select %p261, %s23, 0
          %s263 = sadd.s32 %s262, %s260
          %s264 = smul.addr %s263, 8
          %s265 = scalar_lea.vmem %s5, %s264
        $region40: #{tpu_custom_call.1} parent=23 // pred_fallthru
          _
      $region24: #{tpu_custom_call.1} parent=5 // pred_fallthru
        _
      %p266 = scmp.le.s32.totalorder 1, %s15
      %p267 = scmp.lt.s32.totalorder %s15, 3
      %p268 = pnand %p266, %p267
      %p269 = pneg %p268
      // Predicated region
      $region41: #{tpu_custom_call.1} parent=5 // pred_check
        _
      $region42: #{tpu_custom_call.1} parent=5 // pred_check_branch
        %271 = sbr.rel (%p268) target = $region44
      $region43: #{tpu_custom_call.1} parent=5 // pred_region
        %s272 = ssub.s32 %s15, 1
        %p273 = scmp.lt.s32.totalorder %s24, 1
        %s274 = scalar_select %p273, %s24, 1
        %p275 = scmp.lt.s32.totalorder %s25, 0
        %s276 = scalar_select %p275, %s25, 0
        %s277 = sadd.s32 %s276, %s274
        %s278 = smul.addr %s277, 8
        %s279 = scalar_lea.vmem %s0, %s278
        %p280 = pneg %p55
        %p281 = pneg %p52
        %p282 = scmp.lt.s32.totalorder %s24, 1
        %s283 = scalar_select %p282, %s24, 1
        %s284 = smul.addr %s283, 8
        %s285 = smul.addr %s284, 8
        %s286 = scalar_lea.vmem %s1, %s285
        %p287 = pneg %p81
        %p288 = pneg %p78
        %p289 = scmp.lt.s32.totalorder %s24, 1
        %s290 = scalar_select %p289, %s24, 1
        %s291 = smul.addr %s290, 8
        %s292 = smul.addr %s291, 8
        %s293 = scalar_lea.vmem %s2, %s292
        %p294 = pneg %p107
        %p295 = pneg %p104
        %p296 = pneg %p128
        %p297 = pneg %p125
        %p298 = pneg %p149
        %p299 = pneg %p146
        %p300 = scmp.lt.s32.totalorder %s24, 1
        %s301 = scalar_select %p300, %s24, 1
        %p302 = scmp.lt.s32.totalorder %s25, 0
        %s303 = scalar_select %p302, %s25, 0
        %s304 = sadd.s32 %s303, %s301
        %s305 = smul.addr %s304, 8
        %s306 = scalar_lea.vmem %s5, %s305
        %p307 = pneg %p177
        %p308 = pneg %p174
        %p309 = pneg %p205
        %p310 = pneg %p202
        %s311 = sand.u32 %s192, 1
        %s312 = scalar_lea.sflag [#allocation5], %s311
        %s313 = sand.u32 %s192, 1
        %s314 = smul.addr %s313, 8
        %s315 = scalar_lea.vmem [#allocation4], %s314
        %p316 = scmp.lt.s32.totalorder %s24, 1
        %s317 = scalar_select %p316, %s24, 1
        %p318 = scmp.lt.s32.totalorder %s25, 0
        %s319 = scalar_select %p318, %s25, 0
        %s320 = sadd.s32 %s319, %s317
        %s321 = smul.addr %s320, 8
        %s322 = scalar_lea.vmem %s0, %s321
        %p323 = scmp.lt.s32.totalorder %s24, 1
        %s324 = scalar_select %p323, %s24, 1
        %s325 = smul.addr %s324, 8
        %s326 = smul.addr %s325, 8
        %s327 = scalar_lea.vmem %s1, %s326
        %p328 = scmp.lt.s32.totalorder %s24, 1
        %s329 = scalar_select %p328, %s24, 1
        %s330 = smul.addr %s329, 8
        %s331 = smul.addr %s330, 8
        %s332 = scalar_lea.vmem %s2, %s331
        %p333 = scmp.lt.s32.totalorder %s24, 1
        %s334 = scalar_select %p333, %s24, 1
        %p335 = scmp.lt.s32.totalorder %s25, 0
        %s336 = scalar_select %p335, %s25, 0
        %s337 = sadd.s32 %s336, %s334
        %s338 = smul.addr %s337, 8
        %s339 = scalar_lea.vmem %s5, %s338
        %p341 = scmp.eq.s32.totalorder %s25, 0
        // Predicated region
        $region45: #{tpu_custom_call.1} parent=43 // pred_check
          %p342 = pneg %p341
        $region46: #{tpu_custom_call.1} parent=43 // pred_check_branch
          %344 = sbr.rel (%p342) target = $region48
        $region47: #{tpu_custom_call.1} parent=43 // pred_region
          %v345 = vld [vmem:[%s327] sm:$0xff]
          %v346 = vld [vmem:[%s327 + $0x8] sm:$0xff]
          %v347 = vld [vmem:[%s327 + $0x10] sm:$0xff]
          %v348 = vld [vmem:[%s327 + $0x18] sm:$0xff]
          %v349 = vld [vmem:[%s327 + $0x20] sm:$0xff]
          %v350 = vld [vmem:[%s327 + $0x28] sm:$0xff]
          %v351 = vld [vmem:[%s327 + $0x30] sm:$0xff]
          %v352 = vld [vmem:[%s327 + $0x38] sm:$0xff]
          %v353 = vld [vmem:[%s3 + $0x2] sm:$0x1]
          %v354 = vld [vmem:[%s3 + $0x3] sm:$0x1]
          %vm355 = vcmask 261120
          %v356 = vsel %vm355, %v345, 0.0
          %357 = vadd.xlane.f32.xlu0 %v356
          %v358 = vpop.xlane.xlu0 %357
          %v359 = vsel %vm355, %v346, 0.0
          %360 = vadd.xlane.f32.xlu0 %v359
          %v361 = vpop.xlane.xlu0 %360
          %v362 = vsel %vm355, %v347, 0.0
          %363 = vadd.xlane.f32.xlu0 %v362
          %v364 = vpop.xlane.xlu0 %363
          %v365 = vsel %vm355, %v348, 0.0
          %366 = vadd.xlane.f32.xlu0 %v365
          %v367 = vpop.xlane.xlu0 %366
          %v368 = vsel %vm355, %v349, 0.0
          %369 = vadd.xlane.f32.xlu0 %v368
          %v370 = vpop.xlane.xlu0 %369
          %v371 = vsel %vm355, %v350, 0.0
          %372 = vadd.xlane.f32.xlu0 %v371
          %v373 = vpop.xlane.xlu0 %372
          %v374 = vsel %vm355, %v351, 0.0
          %375 = vadd.xlane.f32.xlu0 %v374
          %v376 = vpop.xlane.xlu0 %375
          %v377 = vsel %vm355, %v352, 0.0
          %378 = vadd.xlane.f32.xlu0 %v377
          %v379 = vpop.xlane.xlu0 %378
          %v380 = vrcp.pop 32.0
          %v381 = vmul.f32 %v358, %v380
          %v382 = vmul.f32 %v361, %v380
          %v383 = vmul.f32 %v364, %v380
          %v384 = vmul.f32 %v367, %v380
          %v385 = vmul.f32 %v370, %v380
          %v386 = vmul.f32 %v373, %v380
          %v387 = vmul.f32 %v376, %v380
          %v388 = vmul.f32 %v379, %v380
          %v389 = vsub.f32 %v345, %v381
          %v390 = vsub.f32 %v346, %v382
          %v391 = vsub.f32 %v347, %v383
          %v392 = vsub.f32 %v348, %v384
          %v393 = vsub.f32 %v349, %v385
          %v394 = vsub.f32 %v350, %v386
          %v395 = vsub.f32 %v351, %v387
          %v396 = vsub.f32 %v352, %v388
          %v397 = vmul.f32 %v389, %v389
          %v398 = vmul.f32 %v390, %v390
          %v399 = vmul.f32 %v391, %v391
          %v400 = vmul.f32 %v392, %v392
          %v401 = vmul.f32 %v393, %v393
          %v402 = vmul.f32 %v394, %v394
          %v403 = vmul.f32 %v395, %v395
          %v404 = vmul.f32 %v396, %v396
          %v405 = vsel %vm355, %v397, 0.0
          %406 = vadd.xlane.f32.xlu0 %v405
          %v407 = vpop.xlane.xlu0 %406
          %v408 = vsel %vm355, %v398, 0.0
          %409 = vadd.xlane.f32.xlu0 %v408
          %v410 = vpop.xlane.xlu0 %409
          %v411 = vsel %vm355, %v399, 0.0
          %412 = vadd.xlane.f32.xlu0 %v411
          %v413 = vpop.xlane.xlu0 %412
          %v414 = vsel %vm355, %v400, 0.0
          %415 = vadd.xlane.f32.xlu0 %v414
          %v416 = vpop.xlane.xlu0 %415
          %v417 = vsel %vm355, %v401, 0.0
          %418 = vadd.xlane.f32.xlu0 %v417
          %v419 = vpop.xlane.xlu0 %418
          %v420 = vsel %vm355, %v402, 0.0
          %421 = vadd.xlane.f32.xlu0 %v420
          %v422 = vpop.xlane.xlu0 %421
          %v423 = vsel %vm355, %v403, 0.0
          %424 = vadd.xlane.f32.xlu0 %v423
          %v425 = vpop.xlane.xlu0 %424
          %v426 = vsel %vm355, %v404, 0.0
          %427 = vadd.xlane.f32.xlu0 %v426
          %v428 = vpop.xlane.xlu0 %427
          %v429 = vmul.f32 %v407, %v380
          %v430 = vmul.f32 %v410, %v380
          %v431 = vmul.f32 %v413, %v380
          %v432 = vmul.f32 %v416, %v380
          %v433 = vmul.f32 %v419, %v380
          %v434 = vmul.f32 %v422, %v380
          %v435 = vmul.f32 %v425, %v380
          %v436 = vmul.f32 %v428, %v380
          %v437 = vadd.f32 %v429, 1e-05
          %v438 = vadd.f32 %v430, 1e-05
          %v439 = vadd.f32 %v431, 1e-05
          %v440 = vadd.f32 %v432, 1e-05
          %v441 = vadd.f32 %v433, 1e-05
          %v442 = vadd.f32 %v434, 1e-05
          %v443 = vadd.f32 %v435, 1e-05
          %v444 = vadd.f32 %v436, 1e-05
          %v445 = vrsqrt.pop %v437
          %v446 = vrsqrt.pop %v438
          %v447 = vrsqrt.pop %v439
          %v448 = vrsqrt.pop %v440
          %v449 = vrsqrt.pop %v441
          %v450 = vrsqrt.pop %v442
          %v451 = vrsqrt.pop %v443
          %v452 = vrsqrt.pop %v444
          %v453 = vmul.f32 %v389, %v445
          %v454 = vmul.f32 %v390, %v446
          %v455 = vmul.f32 %v391, %v447
          %v456 = vmul.f32 %v392, %v448
          %v457 = vmul.f32 %v393, %v449
          %v458 = vmul.f32 %v394, %v450
          %v459 = vmul.f32 %v395, %v451
          %v460 = vmul.f32 %v396, %v452
          %v461 = vlaneseq
          %v462 = vshrl.u32 %v461, 7
          %v463 = vsub.s32 0, %v462
          %v464 = vrot.slane %v353, %v463
          %v465 = vmul.f32 %v453, %v464
          %v466 = vmul.f32 %v454, %v464
          %v467 = vmul.f32 %v455, %v464
          %v468 = vmul.f32 %v456, %v464
          %v469 = vmul.f32 %v457, %v464
          %v470 = vmul.f32 %v458, %v464
          %v471 = vmul.f32 %v459, %v464
          %v472 = vmul.f32 %v460, %v464
          %v473 = vlaneseq
          %v474 = vshrl.u32 %v473, 7
          %v475 = vsub.s32 0, %v474
          %v476 = vrot.slane %v354, %v475
          %v477 = vadd.f32 %v465, %v476
          %v478 = vadd.f32 %v466, %v476
          %v479 = vadd.f32 %v467, %v476
          %v480 = vadd.f32 %v468, %v476
          %v481 = vadd.f32 %v469, %v476
          %v482 = vadd.f32 %v470, %v476
          %v483 = vadd.f32 %v471, %v476
          %v484 = vadd.f32 %v472, %v476
          %v485 = vpack.c.bf16 %v478, %v477
          %v486 = vpack.c.bf16 %v480, %v479
          %v487 = vpack.c.bf16 %v482, %v481
          %v488 = vpack.c.bf16 %v484, %v483
          %v489 = vld [vmem:[%s4] sm:$0xf]
          %v490 = vld [vmem:[%s4 + $0x4] sm:$0xf]
          %v491 = vld [vmem:[%s4 + $0x8] sm:$0xf]
          %v492 = vld [vmem:[%s4 + $0xc] sm:$0xf]
          %v497 = vunpack.c.l.b16 %v489
          %v498 = vunpack.c.l.b16 %v490
          %v499 = vunpack.c.l.b16 %v491
          %v500 = vunpack.c.l.b16 %v492
          %v501 = vpack.c.b16 %v498, %v497
          %v502 = vpack.c.b16 %v500, %v499
          %v506 = vsel %vm355, %v485, 0
          %v509 = vsel %vm355, %v486, 0
          %v512 = vsel %vm355, %v487, 0
          %v515 = vsel %vm355, %v488, 0
          %517 = vmatprep.subr.bf16.mxu0 0
          %518 = vmatpush1.bf16.msra.mxu0 0
          %519 = vmatprep.subr.bf16.mxu0 0
          %520 = vmatpush1.bf16.msra.mxu0 0
          %521 = vmatprep.subr.bf16.mxu0 0
          %522 = vmatpush1.bf16.msra.mxu0 0
          %523 = vmatprep.subr.bf16.mxu0 0
          %524 = vmatpush1.bf16.msra.mxu0 0
          %525 = vmatprep.subr.bf16.mxu0 0
          %526 = vmatpush1.bf16.msra.mxu0 0
          %527 = vmatprep.subr.bf16.mxu0 0
          %528 = vmatpush1.bf16.msra.mxu0 0
          %529 = vmatprep.subr.bf16.mxu0 0
          %530 = vmatpush1.bf16.msra.mxu0 %v502
          %531 = vmatprep.subr.bf16.mxu0 0
          %532 = vmatpush1.bf16.msra.mxu0 %v501
          %533 = vmatprep.subr.bf16.mxu0 0
          %534 = vmatpush2.bf16.msra.mxu0 0
          %535 = vmatprep.subr.bf16.mxu0 0
          %536 = vmatpush2.bf16.msra.mxu0 0
          %537 = vmatprep.subr.bf16.mxu0 0
          %538 = vmatpush2.bf16.msra.mxu0 0
          %539 = vmatprep.subr.bf16.mxu0 0
          %540 = vmatpush2.bf16.msra.mxu0 0
          %541 = vmatprep.subr.bf16.mxu0 0
          %542 = vmatpush2.bf16.msra.mxu0 0
          %543 = vmatprep.subr.bf16.mxu0 0
          %544 = vmatpush2.bf16.msra.mxu0 0
          %545 = vmatprep.subr.bf16.mxu0 0
          %546 = vmatpush2.bf16.msra.mxu0 0
          %547 = vmatprep.subr.bf16.mxu0 0
          %548 = vmatpush2.bf16.msra.mxu0 0
          %549 = vmatprep.mubr.bf16.mxu0 0
          %550 = vmatmul.mubr.bf16.gmra.mxu0 %v506
          %v551 = vpop.f32.mrf.mxu0
          %v552 = vadd.f32 0.0, %v551
          %v553 = vpop.f32.mrf.mxu0
          %v554 = vpop.f32.mrf.mxu0
          %v555 = vadd.f32 0.0, %v554
          %v556 = vpop.f32.mrf.mxu0
          %557 = vmatprep.mubr.bf16.mxu0 0
          %558 = vmatmul.mubr.bf16.gmra.mxu0 %v509
          %v559 = vpop.f32.mrf.mxu0
          %v560 = vadd.f32 0.0, %v559
          %v561 = vpop.f32.mrf.mxu0
          %v562 = vpop.f32.mrf.mxu0
          %v563 = vadd.f32 0.0, %v562
          %v564 = vpop.f32.mrf.mxu0
          %565 = vmatprep.mubr.bf16.mxu0 0
          %566 = vmatmul.mubr.bf16.gmra.mxu0 %v512
          %v567 = vpop.f32.mrf.mxu0
          %v568 = vadd.f32 0.0, %v567
          %v569 = vpop.f32.mrf.mxu0
          %v570 = vpop.f32.mrf.mxu0
          %v571 = vadd.f32 0.0, %v570
          %v572 = vpop.f32.mrf.mxu0
          %573 = vmatprep.mubr.bf16.mxu0 0
          %574 = vmatmul.mubr.bf16.gmra.mxu0 %v515
          %v575 = vpop.f32.mrf.mxu0
          %v576 = vadd.f32 0.0, %v575
          %v577 = vpop.f32.mrf.mxu0
          %v578 = vpop.f32.mrf.mxu0
          %v579 = vadd.f32 0.0, %v578
          %v580 = vpop.f32.mrf.mxu0
          %581 = vdwg.mxu0
          %v582 = vpack.c.bf16 %v555, %v552
          %v583 = vpack.c.bf16 %v563, %v560
          %v584 = vpack.c.bf16 %v571, %v568
          %v585 = vpack.c.bf16 %v579, %v576
          %v590 = vunpack.c.l.b16 %v582
          %v591 = vunpack.c.h.b16 %v582
          %v592 = vunpack.c.l.b16 %v583
          %v593 = vunpack.c.h.b16 %v583
          %v594 = vunpack.c.l.b16 %v584
          %v595 = vunpack.c.h.b16 %v584
          %v596 = vunpack.c.l.b16 %v585
          %v597 = vunpack.c.h.b16 %v585
          %v598 = vpack.c.b16 %v590, %v590
          %v599 = vpack.c.b16 %v591, %v591
          %v600 = vpack.c.b16 %v592, %v592
          %v601 = vpack.c.b16 %v593, %v593
          %v602 = vpack.c.b16 %v594, %v594
          %v603 = vpack.c.b16 %v595, %v595
          %v604 = vpack.c.b16 %v596, %v596
          %v605 = vpack.c.b16 %v597, %v597
          %vm614 = vcmask 257024
          %615 = vst.msk [vmem:[#allocation2] sm:$0xf] %vm614, %v598
          %616 = vst.msk [vmem:[#allocation2 + $0x4] sm:$0xf] %vm614, %v599
          %617 = vst.msk [vmem:[#allocation2 + $0x8] sm:$0xf] %vm614, %v600
          %618 = vst.msk [vmem:[#allocation2 + $0xc] sm:$0xf] %vm614, %v601
          %619 = vst.msk [vmem:[#allocation2 + $0x10] sm:$0xf] %vm614, %v602
          %620 = vst.msk [vmem:[#allocation2 + $0x14] sm:$0xf] %vm614, %v603
          %621 = vst.msk [vmem:[#allocation2 + $0x18] sm:$0xf] %vm614, %v604
          %622 = vst.msk [vmem:[#allocation2 + $0x1c] sm:$0xf] %vm614, %v605
          %v623 = vld [vmem:[%s332] sm:$0xff]
          %v624 = vld [vmem:[%s332 + $0x8] sm:$0xff]
          %v625 = vld [vmem:[%s332 + $0x10] sm:$0xff]
          %v626 = vld [vmem:[%s332 + $0x18] sm:$0xff]
          %v627 = vld [vmem:[%s332 + $0x20] sm:$0xff]
          %v628 = vld [vmem:[%s332 + $0x28] sm:$0xff]
          %v629 = vld [vmem:[%s332 + $0x30] sm:$0xff]
          %v630 = vld [vmem:[%s332 + $0x38] sm:$0xff]
          %v631 = vld [vmem:[%s3 + $0x4] sm:$0x1]
          %v632 = vld [vmem:[%s3 + $0x5] sm:$0x1]
          %v633 = vsel %vm355, %v623, 0.0
          %634 = vadd.xlane.f32.xlu0 %v633
          %v635 = vpop.xlane.xlu0 %634
          %v636 = vsel %vm355, %v624, 0.0
          %637 = vadd.xlane.f32.xlu0 %v636
          %v638 = vpop.xlane.xlu0 %637
          %v639 = vsel %vm355, %v625, 0.0
          %640 = vadd.xlane.f32.xlu0 %v639
          %v641 = vpop.xlane.xlu0 %640
          %v642 = vsel %vm355, %v626, 0.0
          %643 = vadd.xlane.f32.xlu0 %v642
          %v644 = vpop.xlane.xlu0 %643
          %v645 = vsel %vm355, %v627, 0.0
          %646 = vadd.xlane.f32.xlu0 %v645
          %v647 = vpop.xlane.xlu0 %646
          %v648 = vsel %vm355, %v628, 0.0
          %649 = vadd.xlane.f32.xlu0 %v648
          %v650 = vpop.xlane.xlu0 %649
          %v651 = vsel %vm355, %v629, 0.0
          %652 = vadd.xlane.f32.xlu0 %v651
          %v653 = vpop.xlane.xlu0 %652
          %v654 = vsel %vm355, %v630, 0.0
          %655 = vadd.xlane.f32.xlu0 %v654
          %v656 = vpop.xlane.xlu0 %655
          %v657 = vmul.f32 %v635, %v380
          %v658 = vmul.f32 %v638, %v380
          %v659 = vmul.f32 %v641, %v380
          %v660 = vmul.f32 %v644, %v380
          %v661 = vmul.f32 %v647, %v380
          %v662 = vmul.f32 %v650, %v380
          %v663 = vmul.f32 %v653, %v380
          %v664 = vmul.f32 %v656, %v380
          %v665 = vsub.f32 %v623, %v657
          %v666 = vsub.f32 %v624, %v658
          %v667 = vsub.f32 %v625, %v659
          %v668 = vsub.f32 %v626, %v660
          %v669 = vsub.f32 %v627, %v661
          %v670 = vsub.f32 %v628, %v662
          %v671 = vsub.f32 %v629, %v663
          %v672 = vsub.f32 %v630, %v664
          %v673 = vmul.f32 %v665, %v665
          %v674 = vmul.f32 %v666, %v666
          %v675 = vmul.f32 %v667, %v667
          %v676 = vmul.f32 %v668, %v668
          %v677 = vmul.f32 %v669, %v669
          %v678 = vmul.f32 %v670, %v670
          %v679 = vmul.f32 %v671, %v671
          %v680 = vmul.f32 %v672, %v672
          %v681 = vsel %vm355, %v673, 0.0
          %682 = vadd.xlane.f32.xlu0 %v681
          %v683 = vpop.xlane.xlu0 %682
          %v684 = vsel %vm355, %v674, 0.0
          %685 = vadd.xlane.f32.xlu0 %v684
          %v686 = vpop.xlane.xlu0 %685
          %v687 = vsel %vm355, %v675, 0.0
          %688 = vadd.xlane.f32.xlu0 %v687
          %v689 = vpop.xlane.xlu0 %688
          %v690 = vsel %vm355, %v676, 0.0
          %691 = vadd.xlane.f32.xlu0 %v690
          %v692 = vpop.xlane.xlu0 %691
          %v693 = vsel %vm355, %v677, 0.0
          %694 = vadd.xlane.f32.xlu0 %v693
          %v695 = vpop.xlane.xlu0 %694
          %v696 = vsel %vm355, %v678, 0.0
          %697 = vadd.xlane.f32.xlu0 %v696
          %v698 = vpop.xlane.xlu0 %697
          %v699 = vsel %vm355, %v679, 0.0
          %700 = vadd.xlane.f32.xlu0 %v699
          %v701 = vpop.xlane.xlu0 %700
          %v702 = vsel %vm355, %v680, 0.0
          %703 = vadd.xlane.f32.xlu0 %v702
          %v704 = vpop.xlane.xlu0 %703
          %v705 = vmul.f32 %v683, %v380
          %v706 = vmul.f32 %v686, %v380
          %v707 = vmul.f32 %v689, %v380
          %v708 = vmul.f32 %v692, %v380
          %v709 = vmul.f32 %v695, %v380
          %v710 = vmul.f32 %v698, %v380
          %v711 = vmul.f32 %v701, %v380
          %v712 = vmul.f32 %v704, %v380
          %v713 = vadd.f32 %v705, 1e-05
          %v714 = vadd.f32 %v706, 1e-05
          %v715 = vadd.f32 %v707, 1e-05
          %v716 = vadd.f32 %v708, 1e-05
          %v717 = vadd.f32 %v709, 1e-05
          %v718 = vadd.f32 %v710, 1e-05
          %v719 = vadd.f32 %v711, 1e-05
          %v720 = vadd.f32 %v712, 1e-05
          %v721 = vrsqrt.pop %v713
          %v722 = vrsqrt.pop %v714
          %v723 = vrsqrt.pop %v715
          %v724 = vrsqrt.pop %v716
          %v725 = vrsqrt.pop %v717
          %v726 = vrsqrt.pop %v718
          %v727 = vrsqrt.pop %v719
          %v728 = vrsqrt.pop %v720
          %v729 = vmul.f32 %v665, %v721
          %v730 = vmul.f32 %v666, %v722
          %v731 = vmul.f32 %v667, %v723
          %v732 = vmul.f32 %v668, %v724
          %v733 = vmul.f32 %v669, %v725
          %v734 = vmul.f32 %v670, %v726
          %v735 = vmul.f32 %v671, %v727
          %v736 = vmul.f32 %v672, %v728
          %v737 = vlaneseq
          %v738 = vshrl.u32 %v737, 7
          %v739 = vsub.s32 0, %v738
          %v740 = vrot.slane %v631, %v739
          %v741 = vmul.f32 %v729, %v740
          %v742 = vmul.f32 %v730, %v740
          %v743 = vmul.f32 %v731, %v740
          %v744 = vmul.f32 %v732, %v740
          %v745 = vmul.f32 %v733, %v740
          %v746 = vmul.f32 %v734, %v740
          %v747 = vmul.f32 %v735, %v740
          %v748 = vmul.f32 %v736, %v740
          %v749 = vlaneseq
          %v750 = vshrl.u32 %v749, 7
          %v751 = vsub.s32 0, %v750
          %v752 = vrot.slane %v632, %v751
          %v753 = vadd.f32 %v741, %v752
          %v754 = vadd.f32 %v742, %v752
          %v755 = vadd.f32 %v743, %v752
          %v756 = vadd.f32 %v744, %v752
          %v757 = vadd.f32 %v745, %v752
          %v758 = vadd.f32 %v746, %v752
          %v759 = vadd.f32 %v747, %v752
          %v760 = vadd.f32 %v748, %v752
          %v761 = vpack.c.bf16 %v754, %v753
          %v762 = vpack.c.bf16 %v756, %v755
          %v763 = vpack.c.bf16 %v758, %v757
          %v764 = vpack.c.bf16 %v760, %v759
          %v769 = vunpack.c.l.b16 %v761
          %v770 = vunpack.c.h.b16 %v761
          %v771 = vunpack.c.l.b16 %v762
          %v772 = vunpack.c.h.b16 %v762
          %v773 = vunpack.c.l.b16 %v763
          %v774 = vunpack.c.h.b16 %v763
          %v775 = vunpack.c.l.b16 %v764
          %v776 = vunpack.c.h.b16 %v764
          %v777 = vpack.c.b16 %v769, %v769
          %v778 = vpack.c.b16 %v770, %v770
          %v779 = vpack.c.b16 %v771, %v771
          %v780 = vpack.c.b16 %v772, %v772
          %v781 = vpack.c.b16 %v773, %v773
          %v782 = vpack.c.b16 %v774, %v774
          %v783 = vpack.c.b16 %v775, %v775
          %v784 = vpack.c.b16 %v776, %v776
          %793 = vst.msk [vmem:[#allocation3] sm:$0xf] %vm614, %v777
          %794 = vst.msk [vmem:[#allocation3 + $0x4] sm:$0xf] %vm614, %v778
          %795 = vst.msk [vmem:[#allocation3 + $0x8] sm:$0xf] %vm614, %v779
          %796 = vst.msk [vmem:[#allocation3 + $0xc] sm:$0xf] %vm614, %v780
          %797 = vst.msk [vmem:[#allocation3 + $0x10] sm:$0xf] %vm614, %v781
          %798 = vst.msk [vmem:[#allocation3 + $0x14] sm:$0xf] %vm614, %v782
          %799 = vst.msk [vmem:[#allocation3 + $0x18] sm:$0xf] %vm614, %v783
          %800 = vst.msk [vmem:[#allocation3 + $0x1c] sm:$0xf] %vm614, %v784
        $region48: #{tpu_custom_call.1} parent=43 // pred_fallthru
          _
        %v801 = vld [vmem:[%s322] sm:$0xff]
        %v802 = vld [vmem:[%s3] sm:$0x1]
        %v803 = vld [vmem:[%s3 + $0x1] sm:$0x1]
        %vm804 = vcmask 261120
        %v805 = vsel %vm804, %v801, 0.0
        %806 = vadd.xlane.f32.xlu0 %v805
        %v807 = vpop.xlane.xlu0 %806
        %v808 = vrcp.pop 32.0
        %v809 = vmul.f32 %v807, %v808
        %v810 = vsub.f32 %v801, %v809
        %v811 = vmul.f32 %v810, %v810
        %v812 = vsel %vm804, %v811, 0.0
        %813 = vadd.xlane.f32.xlu0 %v812
        %v814 = vpop.xlane.xlu0 %813
        %v815 = vmul.f32 %v814, %v808
        %v816 = vadd.f32 %v815, 1e-05
        %v817 = vrsqrt.pop %v816
        %v818 = vmul.f32 %v810, %v817
        %v819 = vlaneseq
        %v820 = vshrl.u32 %v819, 7
        %v821 = vsub.s32 0, %v820
        %v822 = vrot.slane %v802, %v821
        %v823 = vmul.f32 %v818, %v822
        %v824 = vlaneseq
        %v825 = vshrl.u32 %v824, 7
        %v826 = vsub.s32 0, %v825
        %v827 = vrot.slane %v803, %v826
        %v828 = vadd.f32 %v823, %v827
        %v829 = vpack.c.bf16 %v828, %v828
        %v830 = vld [vmem:[#allocation2] sm:$0xf]
        %v831 = vld [vmem:[#allocation2 + $0x4] sm:$0xf]
        %v832 = vld [vmem:[#allocation2 + $0x8] sm:$0xf]
        %v833 = vld [vmem:[#allocation2 + $0xc] sm:$0xf]
        %v834 = vld [vmem:[#allocation2 + $0x10] sm:$0xf]
        %v835 = vld [vmem:[#allocation2 + $0x14] sm:$0xf]
        %v836 = vld [vmem:[#allocation2 + $0x18] sm:$0xf]
        %v837 = vld [vmem:[#allocation2 + $0x1c] sm:$0xf]
        %v838 = vld [vmem:[#allocation3] sm:$0xf]
        %v839 = vld [vmem:[#allocation3 + $0x4] sm:$0xf]
        %v840 = vld [vmem:[#allocation3 + $0x8] sm:$0xf]
        %v841 = vld [vmem:[#allocation3 + $0xc] sm:$0xf]
        %v842 = vld [vmem:[#allocation3 + $0x10] sm:$0xf]
        %v843 = vld [vmem:[#allocation3 + $0x14] sm:$0xf]
        %v844 = vld [vmem:[#allocation3 + $0x18] sm:$0xf]
        %v845 = vld [vmem:[#allocation3 + $0x1c] sm:$0xf]
        %v846 = vld [vmem:[%s339] sm:$0xff]
        %v855 = vunpack.c.l.b16 %v830
        %v856 = vunpack.c.l.b16 %v831
        %v857 = vunpack.c.l.b16 %v832
        %v858 = vunpack.c.l.b16 %v833
        %v859 = vunpack.c.l.b16 %v834
        %v860 = vunpack.c.l.b16 %v835
        %v861 = vunpack.c.l.b16 %v836
        %v862 = vunpack.c.l.b16 %v837
        %v863 = vpack.c.b16 %v856, %v855
        %v864 = vpack.c.b16 %v858, %v857
        %v865 = vpack.c.b16 %v860, %v859
        %v866 = vpack.c.b16 %v862, %v861
        %vm867 = vcmask 64512
        %v869 = vsel %vm867, %v829, 0
        %v872 = vsel %vm867, %v863, 0
        %v875 = vsel %vm867, %v864, 0
        %v878 = vsel %vm867, %v865, 0
        %v881 = vsel %vm867, %v866, 0
        %883 = vmatprep.subr.bf16.mxu0 0
        %884 = vmatpush1.bf16.xpose.msra.mxu0 0
        %885 = vmatprep.subr.bf16.mxu0 0
        %886 = vmatpush1.bf16.xpose.msra.mxu0 0
        %887 = vmatprep.subr.bf16.mxu0 0
        %888 = vmatpush1.bf16.xpose.msra.mxu0 0
        %889 = vmatprep.subr.bf16.mxu0 0
        %890 = vmatpush1.bf16.xpose.msra.mxu0 0
        %891 = vmatprep.subr.bf16.mxu0 0
        %892 = vmatpush1.bf16.xpose.msra.mxu0 %v881
        %893 = vmatprep.subr.bf16.mxu0 0
        %894 = vmatpush1.bf16.xpose.msra.mxu0 %v878
        %895 = vmatprep.subr.bf16.mxu0 0
        %896 = vmatpush1.bf16.xpose.msra.mxu0 %v875
        %897 = vmatprep.subr.bf16.mxu0 0
        %898 = vmatpush1.bf16.xpose.msra.mxu0 %v872
        %899 = vmatprep.subr.bf16.mxu0 0
        %900 = vmatpush2.bf16.xpose.msra.mxu0 0
        %901 = vmatprep.subr.bf16.mxu0 0
        %902 = vmatpush2.bf16.xpose.msra.mxu0 0
        %903 = vmatprep.subr.bf16.mxu0 0
        %904 = vmatpush2.bf16.xpose.msra.mxu0 0
        %905 = vmatprep.subr.bf16.mxu0 0
        %906 = vmatpush2.bf16.xpose.msra.mxu0 0
        %907 = vmatprep.subr.bf16.mxu0 0
        %908 = vmatpush2.bf16.xpose.msra.mxu0 0
        %909 = vmatprep.subr.bf16.mxu0 0
        %910 = vmatpush2.bf16.xpose.msra.mxu0 0
        %911 = vmatprep.subr.bf16.mxu0 0
        %912 = vmatpush2.bf16.xpose.msra.mxu0 0
        %913 = vmatprep.subr.bf16.mxu0 0
        %914 = vmatpush2.bf16.xpose.msra.mxu0 0
        %915 = vmatprep.mubr.bf16.mxu0 0
        %916 = vmatmul.mubr.bf16.gmra.mxu0 %v869
        %v917 = vpop.f32.mrf.mxu0
        %v918 = vadd.f32 0.0, %v917
        %v919 = vpop.f32.mrf.mxu0
        %v920 = vpop.f32.mrf.mxu0
        %v921 = vpop.f32.mrf.mxu0
        %922 = vdwg.mxu0
        %v923 = vmul.f32 %v918, 0.35355338
        %v924 = vadd.f32 %v923, %v846
        %vm925 = vcmask 523264
        %v926 = vsel %vm925, %v924, -inf
        %927 = vmax.xlane.f32.xlu0 %v926
        %v928 = vpop.xlane.xlu0 %927
        %v929 = vsub.f32 %v924, %v928
        %v930 = vmul.f32 %v929, 1.442695
        %v931 = vpow.pop %v930
        %v932 = vsel %vm925, %v931, 0.0
        %933 = vadd.xlane.f32.xlu0 %v932
        %v934 = vpop.xlane.xlu0 %933
        %v935 = vrcp.pop %v934
        %v936 = vmul.f32 %v931, %v935
        %v937 = vpack.c.bf16 %v936, %v936
        %v946 = vunpack.c.l.b16 %v838
        %v947 = vunpack.c.l.b16 %v839
        %v948 = vunpack.c.l.b16 %v840
        %v949 = vunpack.c.l.b16 %v841
        %v950 = vunpack.c.l.b16 %v842
        %v951 = vunpack.c.l.b16 %v843
        %v952 = vunpack.c.l.b16 %v844
        %v953 = vunpack.c.l.b16 %v845
        %v954 = vpack.c.b16 %v947, %v946
        %v955 = vpack.c.b16 %v949, %v948
        %v956 = vpack.c.b16 %v951, %v950
        %v957 = vpack.c.b16 %v953, %v952
        %v963 = vsel %vm925, %v937, 0
        %965 = vmatprep.subr.bf16.mxu0 0
        %966 = vmatpush1.bf16.msra.mxu0 0
        %967 = vmatprep.subr.bf16.mxu0 0
        %968 = vmatpush1.bf16.msra.mxu0 0
        %969 = vmatprep.subr.bf16.mxu0 0
        %970 = vmatpush1.bf16.msra.mxu0 0
        %971 = vmatprep.subr.bf16.mxu0 0
        %972 = vmatpush1.bf16.msra.mxu0 0
        %973 = vmatprep.subr.bf16.mxu0 0
        %974 = vmatpush1.bf16.msra.mxu0 %v957
        %975 = vmatprep.subr.bf16.mxu0 0
        %976 = vmatpush1.bf16.msra.mxu0 %v956
        %977 = vmatprep.subr.bf16.mxu0 0
        %978 = vmatpush1.bf16.msra.mxu0 %v955
        %979 = vmatprep.subr.bf16.mxu0 0
        %980 = vmatpush1.bf16.msra.mxu0 %v954
        %981 = vmatprep.subr.bf16.mxu0 0
        %982 = vmatpush2.bf16.msra.mxu0 0
        %983 = vmatprep.subr.bf16.mxu0 0
        %984 = vmatpush2.bf16.msra.mxu0 0
        %985 = vmatprep.subr.bf16.mxu0 0
        %986 = vmatpush2.bf16.msra.mxu0 0
        %987 = vmatprep.subr.bf16.mxu0 0
        %988 = vmatpush2.bf16.msra.mxu0 0
        %989 = vmatprep.subr.bf16.mxu0 0
        %990 = vmatpush2.bf16.msra.mxu0 0
        %991 = vmatprep.subr.bf16.mxu0 0
        %992 = vmatpush2.bf16.msra.mxu0 0
        %993 = vmatprep.subr.bf16.mxu0 0
        %994 = vmatpush2.bf16.msra.mxu0 0
        %995 = vmatprep.subr.bf16.mxu0 0
        %996 = vmatpush2.bf16.msra.mxu0 0
        %997 = vmatprep.mubr.bf16.mxu0 0
        %998 = vmatmul.mubr.bf16.gmra.mxu0 %v963
        %v999 = vpop.f32.mrf.mxu0
        %v1000 = vadd.f32 0.0, %v999
        %v1001 = vpop.f32.mrf.mxu0
        %v1002 = vpop.f32.mrf.mxu0
        %v1003 = vpop.f32.mrf.mxu0
        %1004 = vdwg.mxu0
        %1006 = vrot.lane.b32.xlu0 %v829, 120
        %v1007 = vpop.permute.xlu0 %1006
        %1008 = vrot.lane.b32.xlu0 %v863, 120
        %v1009 = vpop.permute.xlu0 %1008
        %1010 = vrot.lane.b32.xlu0 %v864, 120
        %v1011 = vpop.permute.xlu0 %1010
        %1012 = vrot.lane.b32.xlu0 %v865, 120
        %v1013 = vpop.permute.xlu0 %1012
        %1014 = vrot.lane.b32.xlu0 %v866, 120
        %v1015 = vpop.permute.xlu0 %1014
        %v1017 = vsel %vm867, %v1007, 0
        %v1020 = vsel %vm867, %v1009, 0
        %v1023 = vsel %vm867, %v1011, 0
        %v1026 = vsel %vm867, %v1013, 0
        %v1029 = vsel %vm867, %v1015, 0
        %1031 = vmatprep.subr.bf16.mxu0 0
        %1032 = vmatpush1.bf16.xpose.msra.mxu0 0
        %1033 = vmatprep.subr.bf16.mxu0 0
        %1034 = vmatpush1.bf16.xpose.msra.mxu0 0
        %1035 = vmatprep.subr.bf16.mxu0 0
        %1036 = vmatpush1.bf16.xpose.msra.mxu0 0
        %1037 = vmatprep.subr.bf16.mxu0 0
        %1038 = vmatpush1.bf16.xpose.msra.mxu0 0
        %1039 = vmatprep.subr.bf16.mxu0 0
        %1040 = vmatpush1.bf16.xpose.msra.mxu0 %v1029
        %1041 = vmatprep.subr.bf16.mxu0 0
        %1042 = vmatpush1.bf16.xpose.msra.mxu0 %v1026
        %1043 = vmatprep.subr.bf16.mxu0 0
        %1044 = vmatpush1.bf16.xpose.msra.mxu0 %v1023
        %1045 = vmatprep.subr.bf16.mxu0 0
        %1046 = vmatpush1.bf16.xpose.msra.mxu0 %v1020
        %1047 = vmatprep.subr.bf16.mxu0 0
        %1048 = vmatpush2.bf16.xpose.msra.mxu0 0
        %1049 = vmatprep.subr.bf16.mxu0 0
        %1050 = vmatpush2.bf16.xpose.msra.mxu0 0
        %1051 = vmatprep.subr.bf16.mxu0 0
        %1052 = vmatpush2.bf16.xpose.msra.mxu0 0
        %1053 = vmatprep.subr.bf16.mxu0 0
        %1054 = vmatpush2.bf16.xpose.msra.mxu0 0
        %1055 = vmatprep.subr.bf16.mxu0 0
        %1056 = vmatpush2.bf16.xpose.msra.mxu0 0
        %1057 = vmatprep.subr.bf16.mxu0 0
        %1058 = vmatpush2.bf16.xpose.msra.mxu0 0
        %1059 = vmatprep.subr.bf16.mxu0 0
        %1060 = vmatpush2.bf16.xpose.msra.mxu0 0
        %1061 = vmatprep.subr.bf16.mxu0 0
        %1062 = vmatpush2.bf16.xpose.msra.mxu0 0
        %1063 = vmatprep.mubr.bf16.mxu0 0
        %1064 = vmatmul.mubr.bf16.gmra.mxu0 %v1017
        %v1065 = vpop.f32.mrf.mxu0
        %v1066 = vadd.f32 0.0, %v1065
        %v1067 = vpop.f32.mrf.mxu0
        %v1068 = vpop.f32.mrf.mxu0
        %v1069 = vpop.f32.mrf.mxu0
        %1070 = vdwg.mxu0
        %v1071 = vmul.f32 %v1066, 0.35355338
        %v1072 = vadd.f32 %v1071, %v846
        %v1073 = vsel %vm925, %v1072, -inf
        %1074 = vmax.xlane.f32.xlu0 %v1073
        %v1075 = vpop.xlane.xlu0 %1074
        %v1076 = vsub.f32 %v1072, %v1075
        %v1077 = vmul.f32 %v1076, 1.442695
        %v1078 = vpow.pop %v1077
        %v1079 = vsel %vm925, %v1078, 0.0
        %1080 = vadd.xlane.f32.xlu0 %v1079
        %v1081 = vpop.xlane.xlu0 %1080
        %v1082 = vrcp.pop %v1081
        %v1083 = vmul.f32 %v1078, %v1082
        %v1084 = vpack.c.bf16 %v1083, %v1083
        %1085 = vrot.lane.b32.xlu0 %v954, 120
        %v1086 = vpop.permute.xlu0 %1085
        %1087 = vrot.lane.b32.xlu0 %v955, 120
        %v1088 = vpop.permute.xlu0 %1087
        %1089 = vrot.lane.b32.xlu0 %v956, 120
        %v1090 = vpop.permute.xlu0 %1089
        %1091 = vrot.lane.b32.xlu0 %v957, 120
        %v1092 = vpop.permute.xlu0 %1091
        %v1098 = vsel %vm925, %v1084, 0
        %1100 = vmatprep.subr.bf16.mxu0 0
        %1101 = vmatpush1.bf16.msra.mxu0 0
        %1102 = vmatprep.subr.bf16.mxu0 0
        %1103 = vmatpush1.bf16.msra.mxu0 0
        %1104 = vmatprep.subr.bf16.mxu0 0
        %1105 = vmatpush1.bf16.msra.mxu0 0
        %1106 = vmatprep.subr.bf16.mxu0 0
        %1107 = vmatpush1.bf16.msra.mxu0 0
        %1108 = vmatprep.subr.bf16.mxu0 0
        %1109 = vmatpush1.bf16.msra.mxu0 %v1092
        %1110 = vmatprep.subr.bf16.mxu0 0
        %1111 = vmatpush1.bf16.msra.mxu0 %v1090
        %1112 = vmatprep.subr.bf16.mxu0 0
        %1113 = vmatpush1.bf16.msra.mxu0 %v1088
        %1114 = vmatprep.subr.bf16.mxu0 0
        %1115 = vmatpush1.bf16.msra.mxu0 %v1086
        %1116 = vmatprep.subr.bf16.mxu0 0
        %1117 = vmatpush2.bf16.msra.mxu0 0
        %1118 = vmatprep.subr.bf16.mxu0 0
        %1119 = vmatpush2.bf16.msra.mxu0 0
        %1120 = vmatprep.subr.bf16.mxu0 0
        %1121 = vmatpush2.bf16.msra.mxu0 0
        %1122 = vmatprep.subr.bf16.mxu0 0
        %1123 = vmatpush2.bf16.msra.mxu0 0
        %1124 = vmatprep.subr.bf16.mxu0 0
        %1125 = vmatpush2.bf16.msra.mxu0 0
        %1126 = vmatprep.subr.bf16.mxu0 0
        %1127 = vmatpush2.bf16.msra.mxu0 0
        %1128 = vmatprep.subr.bf16.mxu0 0
        %1129 = vmatpush2.bf16.msra.mxu0 0
        %1130 = vmatprep.subr.bf16.mxu0 0
        %1131 = vmatpush2.bf16.msra.mxu0 0
        %1132 = vmatprep.mubr.bf16.mxu0 0
        %1133 = vmatmul.mubr.bf16.gmra.mxu0 %v1098
        %v1134 = vpop.f32.mrf.mxu0
        %v1135 = vadd.f32 0.0, %v1134
        %v1136 = vpop.f32.mrf.mxu0
        %v1137 = vpop.f32.mrf.mxu0
        %v1138 = vpop.f32.mrf.mxu0
        %1139 = vdwg.mxu0
        %1140 = vrot.lane.b32.xlu0 %v829, 112
        %v1141 = vpop.permute.xlu0 %1140
        %1142 = vrot.lane.b32.xlu0 %v863, 112
        %v1143 = vpop.permute.xlu0 %1142
        %1144 = vrot.lane.b32.xlu0 %v864, 112
        %v1145 = vpop.permute.xlu0 %1144
        %1146 = vrot.lane.b32.xlu0 %v865, 112
        %v1147 = vpop.permute.xlu0 %1146
        %1148 = vrot.lane.b32.xlu0 %v866, 112
        %v1149 = vpop.permute.xlu0 %1148
        %v1151 = vsel %vm867, %v1141, 0
        %v1154 = vsel %vm867, %v1143, 0
        %v1157 = vsel %vm867, %v1145, 0
        %v1160 = vsel %vm867, %v1147, 0
        %v1163 = vsel %vm867, %v1149, 0
        %1165 = vmatprep.subr.bf16.mxu0 0
        %1166 = vmatpush1.bf16.xpose.msra.mxu0 0
        %1167 = vmatprep.subr.bf16.mxu0 0
        %1168 = vmatpush1.bf16.xpose.msra.mxu0 0
        %1169 = vmatprep.subr.bf16.mxu0 0
        %1170 = vmatpush1.bf16.xpose.msra.mxu0 0
        %1171 = vmatprep.subr.bf16.mxu0 0
        %1172 = vmatpush1.bf16.xpose.msra.mxu0 0
        %1173 = vmatprep.subr.bf16.mxu0 0
        %1174 = vmatpush1.bf16.xpose.msra.mxu0 %v1163
        %1175 = vmatprep.subr.bf16.mxu0 0
        %1176 = vmatpush1.bf16.xpose.msra.mxu0 %v1160
        %1177 = vmatprep.subr.bf16.mxu0 0
        %1178 = vmatpush1.bf16.xpose.msra.mxu0 %v1157
        %1179 = vmatprep.subr.bf16.mxu0 0
        %1180 = vmatpush1.bf16.xpose.msra.mxu0 %v1154
        %1181 = vmatprep.subr.bf16.mxu0 0
        %1182 = vmatpush2.bf16.xpose.msra.mxu0 0
        %1183 = vmatprep.subr.bf16.mxu0 0
        %1184 = vmatpush2.bf16.xpose.msra.mxu0 0
        %1185 = vmatprep.subr.bf16.mxu0 0
        %1186 = vmatpush2.bf16.xpose.msra.mxu0 0
        %1187 = vmatprep.subr.bf16.mxu0 0
        %1188 = vmatpush2.bf16.xpose.msra.mxu0 0
        %1189 = vmatprep.subr.bf16.mxu0 0
        %1190 = vmatpush2.bf16.xpose.msra.mxu0 0
        %1191 = vmatprep.subr.bf16.mxu0 0
        %1192 = vmatpush2.bf16.xpose.msra.mxu0 0
        %1193 = vmatprep.subr.bf16.mxu0 0
        %1194 = vmatpush2.bf16.xpose.msra.mxu0 0
        %1195 = vmatprep.subr.bf16.mxu0 0
        %1196 = vmatpush2.bf16.xpose.msra.mxu0 0
        %1197 = vmatprep.mubr.bf16.mxu0 0
        %1198 = vmatmul.mubr.bf16.gmra.mxu0 %v1151
        %v1199 = vpop.f32.mrf.mxu0
        %v1200 = vadd.f32 0.0, %v1199
        %v1201 = vpop.f32.mrf.mxu0
        %v1202 = vpop.f32.mrf.mxu0
        %v1203 = vpop.f32.mrf.mxu0
        %1204 = vdwg.mxu0
        %v1205 = vmul.f32 %v1200, 0.35355338
        %v1206 = vadd.f32 %v1205, %v846
        %v1207 = vsel %vm925, %v1206, -inf
        %1208 = vmax.xlane.f32.xlu0 %v1207
        %v1209 = vpop.xlane.xlu0 %1208
        %v1210 = vsub.f32 %v1206, %v1209
        %v1211 = vmul.f32 %v1210, 1.442695
        %v1212 = vpow.pop %v1211
        %v1213 = vsel %vm925, %v1212, 0.0
        %1214 = vadd.xlane.f32.xlu0 %v1213
        %v1215 = vpop.xlane.xlu0 %1214
        %v1216 = vrcp.pop %v1215
        %v1217 = vmul.f32 %v1212, %v1216
        %v1218 = vpack.c.bf16 %v1217, %v1217
        %1219 = vrot.lane.b32.xlu0 %v954, 112
        %v1220 = vpop.permute.xlu0 %1219
        %1221 = vrot.lane.b32.xlu0 %v955, 112
        %v1222 = vpop.permute.xlu0 %1221
        %1223 = vrot.lane.b32.xlu0 %v956, 112
        %v1224 = vpop.permute.xlu0 %1223
        %1225 = vrot.lane.b32.xlu0 %v957, 112
        %v1226 = vpop.permute.xlu0 %1225
        %v1232 = vsel %vm925, %v1218, 0
        %1234 = vmatprep.subr.bf16.mxu0 0
        %1235 = vmatpush1.bf16.msra.mxu0 0
        %1236 = vmatprep.subr.bf16.mxu0 0
        %1237 = vmatpush1.bf16.msra.mxu0 0
        %1238 = vmatprep.subr.bf16.mxu0 0
        %1239 = vmatpush1.bf16.msra.mxu0 0
        %1240 = vmatprep.subr.bf16.mxu0 0
        %1241 = vmatpush1.bf16.msra.mxu0 0
        %1242 = vmatprep.subr.bf16.mxu0 0
        %1243 = vmatpush1.bf16.msra.mxu0 %v1226
        %1244 = vmatprep.subr.bf16.mxu0 0
        %1245 = vmatpush1.bf16.msra.mxu0 %v1224
        %1246 = vmatprep.subr.bf16.mxu0 0
        %1247 = vmatpush1.bf16.msra.mxu0 %v1222
        %1248 = vmatprep.subr.bf16.mxu0 0
        %1249 = vmatpush1.bf16.msra.mxu0 %v1220
        %1250 = vmatprep.subr.bf16.mxu0 0
        %1251 = vmatpush2.bf16.msra.mxu0 0
        %1252 = vmatprep.subr.bf16.mxu0 0
        %1253 = vmatpush2.bf16.msra.mxu0 0
        %1254 = vmatprep.subr.bf16.mxu0 0
        %1255 = vmatpush2.bf16.msra.mxu0 0
        %1256 = vmatprep.subr.bf16.mxu0 0
        %1257 = vmatpush2.bf16.msra.mxu0 0
        %1258 = vmatprep.subr.bf16.mxu0 0
        %1259 = vmatpush2.bf16.msra.mxu0 0
        %1260 = vmatprep.subr.bf16.mxu0 0
        %1261 = vmatpush2.bf16.msra.mxu0 0
        %1262 = vmatprep.subr.bf16.mxu0 0
        %1263 = vmatpush2.bf16.msra.mxu0 0
        %1264 = vmatprep.subr.bf16.mxu0 0
        %1265 = vmatpush2.bf16.msra.mxu0 0
        %1266 = vmatprep.mubr.bf16.mxu0 0
        %1267 = vmatmul.mubr.bf16.gmra.mxu0 %v1232
        %v1268 = vpop.f32.mrf.mxu0
        %v1269 = vadd.f32 0.0, %v1268
        %v1270 = vpop.f32.mrf.mxu0
        %v1271 = vpop.f32.mrf.mxu0
        %v1272 = vpop.f32.mrf.mxu0
        %1273 = vdwg.mxu0
        %1274 = vrot.lane.b32.xlu0 %v829, 104
        %v1275 = vpop.permute.xlu0 %1274
        %1276 = vrot.lane.b32.xlu0 %v863, 104
        %v1277 = vpop.permute.xlu0 %1276
        %1278 = vrot.lane.b32.xlu0 %v864, 104
        %v1279 = vpop.permute.xlu0 %1278
        %1280 = vrot.lane.b32.xlu0 %v865, 104
        %v1281 = vpop.permute.xlu0 %1280
        %1282 = vrot.lane.b32.xlu0 %v866, 104
        %v1283 = vpop.permute.xlu0 %1282
        %v1285 = vsel %vm867, %v1275, 0
        %v1288 = vsel %vm867, %v1277, 0
        %v1291 = vsel %vm867, %v1279, 0
        %v1294 = vsel %vm867, %v1281, 0
        %v1297 = vsel %vm867, %v1283, 0
        %1299 = vmatprep.subr.bf16.mxu0 0
        %1300 = vmatpush1.bf16.xpose.msra.mxu0 0
        %1301 = vmatprep.subr.bf16.mxu0 0
        %1302 = vmatpush1.bf16.xpose.msra.mxu0 0
        %1303 = vmatprep.subr.bf16.mxu0 0
        %1304 = vmatpush1.bf16.xpose.msra.mxu0 0
        %1305 = vmatprep.subr.bf16.mxu0 0
        %1306 = vmatpush1.bf16.xpose.msra.mxu0 0
        %1307 = vmatprep.subr.bf16.mxu0 0
        %1308 = vmatpush1.bf16.xpose.msra.mxu0 %v1297
        %1309 = vmatprep.subr.bf16.mxu0 0
        %1310 = vmatpush1.bf16.xpose.msra.mxu0 %v1294
        %1311 = vmatprep.subr.bf16.mxu0 0
        %1312 = vmatpush1.bf16.xpose.msra.mxu0 %v1291
        %1313 = vmatprep.subr.bf16.mxu0 0
        %1314 = vmatpush1.bf16.xpose.msra.mxu0 %v1288
        %1315 = vmatprep.subr.bf16.mxu0 0
        %1316 = vmatpush2.bf16.xpose.msra.mxu0 0
        %1317 = vmatprep.subr.bf16.mxu0 0
        %1318 = vmatpush2.bf16.xpose.msra.mxu0 0
        %1319 = vmatprep.subr.bf16.mxu0 0
        %1320 = vmatpush2.bf16.xpose.msra.mxu0 0
        %1321 = vmatprep.subr.bf16.mxu0 0
        %1322 = vmatpush2.bf16.xpose.msra.mxu0 0
        %1323 = vmatprep.subr.bf16.mxu0 0
        %1324 = vmatpush2.bf16.xpose.msra.mxu0 0
        %1325 = vmatprep.subr.bf16.mxu0 0
        %1326 = vmatpush2.bf16.xpose.msra.mxu0 0
        %1327 = vmatprep.subr.bf16.mxu0 0
        %1328 = vmatpush2.bf16.xpose.msra.mxu0 0
        %1329 = vmatprep.subr.bf16.mxu0 0
        %1330 = vmatpush2.bf16.xpose.msra.mxu0 0
        %1331 = vmatprep.mubr.bf16.mxu0 0
        %1332 = vmatmul.mubr.bf16.gmra.mxu0 %v1285
        %v1333 = vpop.f32.mrf.mxu0
        %v1334 = vadd.f32 0.0, %v1333
        %v1335 = vpop.f32.mrf.mxu0
        %v1336 = vpop.f32.mrf.mxu0
        %v1337 = vpop.f32.mrf.mxu0
        %1338 = vdwg.mxu0
        %v1339 = vmul.f32 %v1334, 0.35355338
        %v1340 = vadd.f32 %v1339, %v846
        %v1341 = vsel %vm925, %v1340, -inf
        %1342 = vmax.xlane.f32.xlu0 %v1341
        %v1343 = vpop.xlane.xlu0 %1342
        %v1344 = vsub.f32 %v1340, %v1343
        %v1345 = vmul.f32 %v1344, 1.442695
        %v1346 = vpow.pop %v1345
        %v1347 = vsel %vm925, %v1346, 0.0
        %1348 = vadd.xlane.f32.xlu0 %v1347
        %v1349 = vpop.xlane.xlu0 %1348
        %v1350 = vrcp.pop %v1349
        %v1351 = vmul.f32 %v1346, %v1350
        %v1352 = vpack.c.bf16 %v1351, %v1351
        %1353 = vrot.lane.b32.xlu0 %v954, 104
        %v1354 = vpop.permute.xlu0 %1353
        %1355 = vrot.lane.b32.xlu0 %v955, 104
        %v1356 = vpop.permute.xlu0 %1355
        %1357 = vrot.lane.b32.xlu0 %v956, 104
        %v1358 = vpop.permute.xlu0 %1357
        %1359 = vrot.lane.b32.xlu0 %v957, 104
        %v1360 = vpop.permute.xlu0 %1359
        %v1366 = vsel %vm925, %v1352, 0
        %1368 = vmatprep.subr.bf16.mxu0 0
        %1369 = vmatpush1.bf16.msra.mxu0 0
        %1370 = vmatprep.subr.bf16.mxu0 0
        %1371 = vmatpush1.bf16.msra.mxu0 0
        %1372 = vmatprep.subr.bf16.mxu0 0
        %1373 = vmatpush1.bf16.msra.mxu0 0
        %1374 = vmatprep.subr.bf16.mxu0 0
        %1375 = vmatpush1.bf16.msra.mxu0 0
        %1376 = vmatprep.subr.bf16.mxu0 0
        %1377 = vmatpush1.bf16.msra.mxu0 %v1360
        %1378 = vmatprep.subr.bf16.mxu0 0
        %1379 = vmatpush1.bf16.msra.mxu0 %v1358
        %1380 = vmatprep.subr.bf16.mxu0 0
        %1381 = vmatpush1.bf16.msra.mxu0 %v1356
        %1382 = vmatprep.subr.bf16.mxu0 0
        %1383 = vmatpush1.bf16.msra.mxu0 %v1354
        %1384 = vmatprep.subr.bf16.mxu0 0
        %1385 = vmatpush2.bf16.msra.mxu0 0
        %1386 = vmatprep.subr.bf16.mxu0 0
        %1387 = vmatpush2.bf16.msra.mxu0 0
        %1388 = vmatprep.subr.bf16.mxu0 0
        %1389 = vmatpush2.bf16.msra.mxu0 0
        %1390 = vmatprep.subr.bf16.mxu0 0
        %1391 = vmatpush2.bf16.msra.mxu0 0
        %1392 = vmatprep.subr.bf16.mxu0 0
        %1393 = vmatpush2.bf16.msra.mxu0 0
        %1394 = vmatprep.subr.bf16.mxu0 0
        %1395 = vmatpush2.bf16.msra.mxu0 0
        %1396 = vmatprep.subr.bf16.mxu0 0
        %1397 = vmatpush2.bf16.msra.mxu0 0
        %1398 = vmatprep.subr.bf16.mxu0 0
        %1399 = vmatpush2.bf16.msra.mxu0 0
        %1400 = vmatprep.mubr.bf16.mxu0 0
        %1401 = vmatmul.mubr.bf16.gmra.mxu0 %v1366
        %v1402 = vpop.f32.mrf.mxu0
        %v1403 = vadd.f32 0.0, %v1402
        %v1404 = vpop.f32.mrf.mxu0
        %v1405 = vpop.f32.mrf.mxu0
        %v1406 = vpop.f32.mrf.mxu0
        %1407 = vdwg.mxu0
        %1409 = vrot.lane.b32.xlu0 %v1135, 8
        %v1410 = vpop.permute.xlu0 %1409
        %1413 = vrot.lane.b32.xlu0 %v1269, 16
        %v1414 = vpop.permute.xlu0 %1413
        %1417 = vrot.lane.b32.xlu0 %v1403, 24
        %v1418 = vpop.permute.xlu0 %1417
        %v1420 = vsel %vm867, %v1000, %v1410
        %vm1421 = vcmask 130048
        %v1422 = vsel %vm1421, %v1420, %v1414
        %vm1423 = vcmask 195584
        %v1424 = vsel %vm1423, %v1422, %v1418
        %1425 = vst.msk [vmem:[%s315] sm:$0xff] %vm804, %v1424
        %s1426 = sand.u32 %s192, 1
        %s1427 = scalar_lea.sflag [#allocation5], %s1426
        %s1428 = sand.u32 %s192, 1
        %s1429 = smul.addr %s1428, 8
        %s1430 = scalar_lea.vmem [#allocation4], %s1429
        // Predicated region
        $region49: #{tpu_custom_call.1} parent=43 // pred_check
          %p1431 = pneg %p202
        $region50: #{tpu_custom_call.1} parent=43 // pred_check_branch
          %1433 = sbr.rel (%p1431) target = $region52
        $region51: #{tpu_custom_call.1} parent=43 // pred_region
          %s1435 = ssub.s32 128, 128
          %1436 = vsyncadd %s1427, %s1435
          %s1437 = sadd.s32 %s25, %s24
          %s1438 = smul.addr %s1437, 128
          %s1439 = scalar_lea.hbm %s6, %s1438
          %s1441 = sshll.u32 %s1430, 4
          %s1442 = int_to_ptr.vmem [resolvable:$true] %s1441
          %1444 = dma.vmem_to_hbm [thread:$0]  %s1442, 128, %s1439, %s1427
        $region52: #{tpu_custom_call.1} parent=43 // pred_fallthru
          _
      $region44: #{tpu_custom_call.1} parent=5 // pred_fallthru
        _
      %p1445 = scmp.le.s32.totalorder 2, %s15
      // Predicated region
      $region53: #{tpu_custom_call.1} parent=5 // pred_check
        %p1446 = pneg %p1445
      $region54: #{tpu_custom_call.1} parent=5 // pred_check_branch
        %1448 = sbr.rel (%p1446) target = $region56
      $region55: #{tpu_custom_call.1} parent=5 // pred_region
        %s1449 = ssub.s32 %s15, 2
        // Predicated region
        $region57: #{tpu_custom_call.1} parent=55 // pred_check
          %p1450 = pneg %p208
        $region58: #{tpu_custom_call.1} parent=55 // pred_check_branch
          %1452 = sbr.rel (%p1450) target = $region60
        $region59: #{tpu_custom_call.1} parent=55 // pred_region
          %s1453 = sand.u32 %s193, 1
          %s1454 = scalar_lea.sflag [#allocation5], %s1453
          %s1455 = sand.u32 %s193, 1
          %s1456 = smul.addr %s1455, 8
          %s1457 = scalar_lea.vmem [#allocation4], %s1456
          %1458 = dma.done %s1454, 128
        $region60: #{tpu_custom_call.1} parent=55 // pred_fallthru
          _
      $region56: #{tpu_custom_call.1} parent=5 // pred_fallthru
        _
    $region6: #{tpu_custom_call.1} parent=1 // loop_footer
      %s19 = sadd.s32 1, %s15
    $region7: #{tpu_custom_call.1} parent=1 // loop_footer_branch
      %14 = sbr.rel target = $region3
    $region8: #{tpu_custom_call.1} parent=1 // loop_exit
      _
    %1459 = vsyncpa [#allocation5], 1
    %s1460 = scalar_lea.sflag [#allocation5], 1
    %1461 = vsyncpa %s1460, 1

</llo_original>
